<compile_context>
chip_gen: v7x
topology: tpu7x:2x2x1
jax: 0.10.0
libtpu: 0.0.40
codegen_flags: <defaults>
</compile_context>

<pallas_src>
import math
from functools import partial

import jax
import jax.numpy as jnp
from jax.experimental import pallas as pl
from jax.experimental.pallas import tpu as pltpu

TOKEN_SELF_ATTN_VALUE = -50000.0
_PALLAS_MIN_BUCKET = 64          # below this the Pallas path is not worth it


def _cdiv(a, b):
    return -(-a // b)


# --------------------------------------------------------------------------
# Pallas kernel: attention for GBB LSH buckets, look-one-back rebuilt in VMEM
# --------------------------------------------------------------------------
def _lsh_bucket_attn_kernel(seqlen_ref,
                            tq_ref, tkc_ref, tkp_ref, tvc_ref, tvp_ref,
                            bq_ref, posc_ref, posp_ref,
                            so_ref, lse_ref,
                            *, softmax_temp, masked_value, causal):
    # tq_ref  : (GBB, bs, E)  queries of the current buckets            (bf16)
    # tkc_ref : (GBB, bs, E)  L2-normalized keys of the current buckets (bf16)
    # tkp_ref : (1,   bs, E)  keys of the bucket just before this group (bf16)
    # tvc_ref : (GBB, bs, D) / tvp_ref: (1, bs, D)  values              (bf16)
    # bq_ref  : (GBB, bs, 1)  query positions (sublane-broadcast form,  int32)
    # posc_ref: (GBB, 1, bs)  key positions of current buckets (lane-dense)
    # posp_ref: (1,   1, bs)  key positions of the previous bucket
    seqlen = seqlen_ref[0]
    q = tq_ref[...]
    kc = tkc_ref[...]
    vc = tvc_ref[...]
    bq = bq_ref[...]
    pc = posc_ref[...]

    gbb = q.shape[0]
    # look-one-back reconstructed in VMEM: bucket i's "previous bucket" is
    # group slot i-1; slot 0 uses the *_prev blocks (index_map handles the
    # row-level wraparound to the true last bucket).
    if gbb > 1:
        k_prev = jnp.concatenate([tkp_ref[...], kc[:-1]], axis=0)
        v_prev = jnp.concatenate([tvp_ref[...], vc[:-1]], axis=0)
        p_prev = jnp.concatenate([posp_ref[...], pc[:-1]], axis=0)
    else:
        k_prev, v_prev, p_prev = tkp_ref[...], tvp_ref[...], posp_ref[...]

    def scores(k, pos_k):
        # batched q @ k^T on the MXU with f32 accumulation
        x = jnp.einsum('gie,gje->gij', q, k,
                       preferred_element_type=jnp.float32) * softmax_temp
        # padding + causal masks fused into a single select
        invalid = pos_k >= seqlen
        if causal:
            invalid = invalid | (bq < pos_k)
        x = jnp.where(invalid, masked_value, x)
        # a token never attends to itself except as a last resort
        return jnp.where(bq == pos_k, TOKEN_SELF_ATTN_VALUE, x)

    s_cur = scores(kc, pc)          # (GBB, bs, bs)
    s_prv = scores(k_prev, p_prev)  # (GBB, bs, bs)

    # numerically stable softmax + logsumexp over the (current + previous)
    # key window; mathematically identical to softmax over the concat.
    m = jnp.maximum(jnp.max(s_cur, axis=-1, keepdims=True),
                    jnp.max(s_prv, axis=-1, keepdims=True))
    e_cur = jnp.exp(s_cur - m)
    e_prv = jnp.exp(s_prv - m)
    s = (jnp.sum(e_cur, axis=-1, keepdims=True)
         + jnp.sum(e_prv, axis=-1, keepdims=True))
    lse_ref[...] = (m + jnp.log(s)).astype(lse_ref.dtype)

    acc = (jnp.einsum('gij,gjd->gid', e_cur.astype(vc.dtype), vc,
                      preferred_element_type=jnp.float32)
           + jnp.einsum('gij,gjd->gid', e_prv.astype(v_prev.dtype), v_prev,
                        preferred_element_type=jnp.float32))
    # exact reciprocal so the normalization is consistent with the exact lse
    so_ref[...] = (acc * pl.reciprocal(s, approx=False)).astype(so_ref.dtype)
    # TODO(synk): lse / bq could be made lane-dense ((GBB,1,bs)); that needs an
    # in-kernel (bs,1)<->(1,bs) relayout whose lowering is risky for small
    # head/bucket dims, and their HBM traffic is <2% of the kernel's total.


# --------------------------------------------------------------------------
# VMEM-aware tile sizing
# --------------------------------------------------------------------------
def _vmem_limit_bytes():
    cap = 64 << 20                              # conservative default (v7x)
    try:
        cap = int(getattr(pltpu.get_tpu_info(), "vmem_capacity_bytes", cap))
    except Exception:
        pass
    if cap <= (64 << 20):
        return 48 << 20                         # v7x-class: headroom out of 64 MiB
    return min(cap - (24 << 20), 104 << 20)     # v5e / v6e: 128 MiB physical


def _pick_group_buckets(nb, n_rows, bs, e, d, itm, vmem_limit,
                        max_gbb=256, min_steps=8):
    """Buckets per grid step: as large as a conservative VMEM budget allows
    (double-buffered I/O blocks + f32 score/exp intermediates), capped so the
    grid keeps enough steps for pipelining and for both TCs on v7x."""
    io_per_bucket = itm * (2 * bs * e + 2 * bs * d) + 4 * (3 * bs)   # q,k,v,o + bq,pos,lse
    prev_bytes = itm * (bs * e + bs * d) + 4 * bs                    # 1-bucket look-back blocks
    interm_per_bucket = (4 * (4 * bs * bs + bs * d)                  # s/e (x2 windows), acc (f32)
                         + itm * (bs * e + bs * d) + 8 * bs)         # in-VMEM look-back copies
    budget = int(vmem_limit * 0.45)
    denom = 2 * io_per_bucket + interm_per_bucket
    gbb = max(1, min(nb, max_gbb, (budget - 2 * prev_bytes) // max(1, denom)))
    need_groups = _cdiv(min_steps, max(1, n_rows))
    if need_groups > 1:
        gbb = min(gbb, max(1, nb // need_groups))
    return int(gbb)


# --------------------------------------------------------------------------
# Bucketed attention: Pallas + plain-JAX reference (same interface/layout)
# --------------------------------------------------------------------------
def _bucket_attention_pallas(tq, tk, tv, bq, pos, seqlen_arr,
                             softmax_temp, causal, group_buckets=None):
    # tq/tk/tv: (R, NB, bs, {E,D}) bf16 ; bq: (R, NB, bs, 1) ; pos: (R, NB, 1, bs)
    R, NB, bs, E = tq.shape
    D = tv.shape[-1]
    itm = jnp.dtype(tq.dtype).itemsize

    vmem_limit = _vmem_limit_bytes()
    if group_buckets is not None:
        GBB = max(1, min(int(group_buckets), NB))
    else:
        GBB = _pick_group_buckets(NB, R, bs, E, D, itm, vmem_limit)
    G = _cdiv(NB, GBB)
    NBp = G * GBB
    if NBp != NB:
        # pad the bucket axis; padded (garbage) buckets are dropped after unsort
        def padb(x):
            return jnp.pad(x, ((0, 0), (0, NBp - NB)) + ((0, 0),) * (x.ndim - 2))
        tq, tk, tv, bq, pos = map(padb, (tq, tk, tv, bq, pos))

    masked_value = -float(jnp.finfo(jnp.float32).max)
    kernel = partial(_lsh_bucket_attn_kernel,
                     softmax_temp=float(softmax_temp),
                     masked_value=masked_value,
                     causal=bool(causal))

    def cur(r, g, seqlen_ref):
        return (r, g, 0, 0)

    def prev(r, g, seqlen_ref):
        # bucket just before this group, wrapping at the TRUE bucket count
        return (r, (g * GBB + NB - 1) % NB, 0, 0)

    so, lse = pl.pallas_call(
        kernel,
        out_shape=(jax.ShapeDtypeStruct((R, NBp, bs, D), tq.dtype),   # bf16
                   jax.ShapeDtypeStruct((R, NBp, bs, 1), jnp.float32)),
        grid_spec=pltpu.PrefetchScalarGridSpec(
            num_scalar_prefetch=1,                 # seqlen_og in SMEM
            grid=(R, G),
            in_specs=[
                pl.BlockSpec((None, GBB, bs, E), cur),    # tq
                pl.BlockSpec((None, GBB, bs, E), cur),    # tk (current buckets)
                pl.BlockSpec((None, 1,   bs, E), prev),   # tk (look-back bucket)
                pl.BlockSpec((None, GBB, bs, D), cur),    # tv (current buckets)
                pl.BlockSpec((None, 1,   bs, D), prev),   # tv (look-back bucket)
                pl.BlockSpec((None, GBB, bs, 1), cur),    # query positions
                pl.BlockSpec((None, GBB, 1, bs), cur),    # key positions (current)
                pl.BlockSpec((None, 1,   1, bs), prev),   # key positions (look-back)
            ],
            out_specs=(
                pl.BlockSpec((None, GBB, bs, D), cur),
                pl.BlockSpec((None, GBB, bs, 1), cur),
            ),
        ),
        compiler_params=pltpu.CompilerParams(
            dimension_semantics=("parallel", "parallel"),
            vmem_limit_bytes=int(vmem_limit)),
    )(seqlen_arr, tq, tk, tk, tv, tv, bq, pos, pos)

    if NBp != NB:
        so, lse = so[:, :NB], lse[:, :NB]
    return so, lse


def _bucket_attention_ref(tq, tk, tv, bq, pos, seqlen_arr,
                          softmax_temp, causal, group_buckets=None):
    # plain-JAX mirror of the kernel math (correctness / small-bucket fallback)
    del group_buckets
    masked_value = -jnp.finfo(jnp.float32).max
    seqlen = seqlen_arr[0]
    k_prev = jnp.roll(tk, 1, axis=1)
    v_prev = jnp.roll(tv, 1, axis=1)
    p_prev = jnp.roll(pos, 1, axis=1)
    k_all = jnp.concatenate([tk, k_prev], axis=2)       # (R, NB, 2bs, E)
    v_all = jnp.concatenate([tv, v_prev], axis=2)
    bkv = jnp.concatenate([pos, p_prev], axis=3)        # (R, NB, 1, 2bs)
    inner = jnp.einsum('rnie,rnje->rnij', tq, k_all,
                       preferred_element_type=jnp.float32) * softmax_temp
    invalid = bkv >= seqlen
    if causal:
        invalid = invalid | (bq < bkv)
    inner = jnp.where(invalid, masked_value, inner)
    inner = jnp.where(bq == bkv, TOKEN_SELF_ATTN_VALUE, inner)
    m = jnp.max(inner, axis=-1, keepdims=True)
    e = jnp.exp(inner - m)
    s = jnp.sum(e, axis=-1, keepdims=True)
    lse = m + jnp.log(s)
    so = jnp.einsum('rnij,rnjd->rnid', e.astype(v_all.dtype), v_all,
                    preferred_element_type=jnp.float32) / s
    return so.astype(tq.dtype), lse


# --------------------------------------------------------------------------
# Full forward pass (hashing / sorting glue in plain JAX)
# --------------------------------------------------------------------------
def reformer_attention2(qk, k, v, *, bucket_size, n_hashes, rotation_key,
                        softmax_temp=None, causal=False, use_pallas=True,
                        group_buckets=None):
    """Mirrors ReformerAttention2.forward with default flags:
    attend_across_buckets=True, allow_duplicate_attention=True,
    rehash_each_round=True, dropout=0, attn_mask=None, need_weights=False."""
    del k  # `k` is unused by the reference forward pass as well
    B, seqlen_og, H, E = qk.shape
    D = v.shape[-1]

    # pad sequence to multiple of 2*bucket_size (padded keys masked in-kernel)
    multiple = 2 * bucket_size
    pad_len = (-seqlen_og) % multiple
    if pad_len:
        qk = jnp.pad(qk, ((0, 0), (0, pad_len), (0, 0), (0, 0)))
        v = jnp.pad(v, ((0, 0), (0, pad_len), (0, 0), (0, 0)))
    T = qk.shape[1]
    temp = softmax_temp if softmax_temp is not None else 1.0 / math.sqrt(E)

    BH = B * H
    compute_dtype = jnp.bfloat16   # HBM-bound kernel: carry bucketed data in bf16

    # 'b t h e -> (b h) t e'  (hashing / normalization kept in f32)
    qk_f32 = jnp.transpose(qk, (0, 2, 1, 3)).reshape(BH, T, E).astype(jnp.float32)
    v_bf = jnp.transpose(v, (0, 2, 1, 3)).reshape(BH, T, D).astype(compute_dtype)

    n_buckets = T // bucket_size
    assert n_buckets % 2 == 0

    # ---- hash_vectors (random rotations, rehash_each_round=True) ----
    rot = jax.random.normal(rotation_key, (1, E, n_hashes, n_buckets // 2),
                            dtype=jnp.float32)
    rot = jnp.broadcast_to(rot, (BH, E, n_hashes, n_buckets // 2))
    rotated = jnp.einsum('btf,bfhi->bhti', qk_f32, rot)
    rotated = jnp.concatenate([rotated, -rotated], axis=-1)
    buckets = jnp.argmax(rotated, axis=-1).astype(jnp.int32)   # (BH, nh, T)

    # 'b nhashes seqlen -> nhashes b seqlen'
    buckets = jnp.transpose(buckets, (1, 0, 2))
    perm = jnp.argsort(buckets, axis=-1, stable=True).astype(jnp.int32)
    perm_inv = jnp.argsort(perm, axis=-1).astype(jnp.int32)

    R = n_hashes * BH

    # gather into sorted bucket order (no look-one-back duplication here:
    # the previous-bucket window is reconstructed inside the kernel)
    def sort_rows(x):
        d = x.shape[-1]
        xb = jnp.broadcast_to(x[None], (n_hashes,) + x.shape)
        idx = jnp.broadcast_to(perm[..., None], perm.shape + (d,))
        g = jnp.take_along_axis(xb, idx, axis=2)
        return g.reshape(R, n_buckets, bucket_size, d)

    norm = jnp.linalg.norm(qk_f32, axis=-1, keepdims=True)
    qk_norm = (qk_f32 / jnp.maximum(norm, 1e-12)).astype(compute_dtype)
    qk_bf = qk_f32.astype(compute_dtype)

    tq = sort_rows(qk_bf)        # (R, NB, bs, E)
    tk = sort_rows(qk_norm)      # (R, NB, bs, E)
    tv = sort_rows(v_bf)         # (R, NB, bs, D)

    bq = perm.reshape(R, n_buckets, bucket_size, 1)     # query positions
    pos = perm.reshape(R, n_buckets, 1, bucket_size)    # key positions (lane-dense)
    seqlen_arr = jnp.array([seqlen_og], dtype=jnp.int32)

    # TODO(synk): attend_across_buckets=False / allow_duplicate_attention=False
    # branches, attn_mask and the need_weights attention-scatter output are not
    # implemented; attention_dropout / drop_for_hash_rate default to 0.0.
    # TODO(synk): longer term, move sort_rows into the kernel (scalar-prefetched
    # perm in SMEM + manual row DMAs from the un-sorted qk/v in HBM) so the
    # bucketed tensors are never materialized n_hashes times in HBM.

    run_pallas = use_pallas and bucket_size >= _PALLAS_MIN_BUCKET and bucket_size % 8 == 0
    fn = _bucket_attention_pallas if run_pallas else _bucket_attention_ref
    so, lse = fn(tq, tk, tv, bq, pos, seqlen_arr, temp, causal,
                 group_buckets=group_buckets)

    so = so.reshape(n_hashes, BH, T, D)
    lse = lse.reshape(n_hashes, BH, T, 1)

    def unsort(x):
        d = x.shape[-1]
        idx = jnp.broadcast_to(perm_inv[..., None], perm_inv.shape + (d,))
        return jnp.take_along_axis(x, idx, axis=2)

    o = unsort(so)                                   # (nh, BH, T, D) bf16
    logits = unsort(lse)                             # (nh, BH, T, 1) f32
    probs = jnp.exp(logits - jax.nn.logsumexp(logits, axis=0, keepdims=True))
    out = jnp.sum(o.astype(jnp.float32) * probs, axis=0)   # (BH, T, D) f32

    # '(b h) t d -> b t h d', then cut padding
    out = out.reshape(B, H, T, D).transpose(0, 2, 1, 3)[:, :seqlen_og]
    return out.astype(qk.dtype)


# --------------------------------------------------------------------------
if __name__ == "__main__":
    key = jax.random.PRNGKey(0)
    k_qk, k_v, k_rot = jax.random.split(key, 3)

    def run_case(seqlen, B, H, E, D, bucket_size, n_hashes, causal,
                 group_buckets=None, tol=2e-2):
        qk = jax.random.normal(k_qk, (B, seqlen, H, E), dtype=jnp.float32)
        k_in = jnp.zeros((B, seqlen, H, E), dtype=jnp.float32)  # unused (as in reference)
        v = jax.random.normal(k_v, (B, seqlen, H, D), dtype=jnp.float32)

        out = reformer_attention2(qk, k_in, v, bucket_size=bucket_size,
                                  n_hashes=n_hashes, rotation_key=k_rot,
                                  causal=causal, use_pallas=True,
                                  group_buckets=group_buckets)
        out = jax.block_until_ready(out)

        out_ref = reformer_attention2(qk, k_in, v, bucket_size=bucket_size,
                                      n_hashes=n_hashes, rotation_key=k_rot,
                                      causal=causal, use_pallas=False)
        out_ref = jax.block_until_ready(out_ref)

        assert out.shape == (B, seqlen, H, D), out.shape
        max_err = float(jnp.max(jnp.abs(out - out_ref)))
        assert max_err < tol, f"mismatch (T={seqlen}, causal={causal}): {max_err}"

    # Pallas path: bucket_size=64, no sequence padding, GBB=1 grouping
    run_case(seqlen=128, B=1, H=2, E=16, D=16, bucket_size=64, n_hashes=2,
             causal=False)
    # Pallas path: padded sequence + causal + GBB>1 (in-VMEM look-back concat)
    run_case(seqlen=500, B=1, H=1, E=16, D=16, bucket_size=64, n_hashes=2,
             causal=True)
    # Pallas path: bucket-axis padding (n_buckets=6 with group_buckets=4)
    run_case(seqlen=384, B=1, H=1, E=16, D=16, bucket_size=64, n_hashes=2,
             causal=False, group_buckets=4)
    # tiny buckets -> falls back to the plain-JAX reference path
    run_case(seqlen=16, B=2, H=2, E=16, D=16, bucket_size=4, n_hashes=2,
             causal=False)
    print("KERNEL_OK")
</pallas_src>

<mosaic_0001>
module attributes {stable_mosaic.version = 11 : i64} {
  func.func @_lsh_bucket_attn_kernel(%arg0: i32, %arg1: i32, %arg2: memref<1xi32, #tpu.memory_space<smem>>, %arg3: memref<1x1x64x16xbf16, #tpu.memory_space<vmem>>, %arg4: memref<1x1x64x16xbf16, #tpu.memory_space<vmem>>, %arg5: memref<1x1x64x16xbf16, #tpu.memory_space<vmem>>, %arg6: memref<1x1x64x16xbf16, #tpu.memory_space<vmem>>, %arg7: memref<1x1x64x16xbf16, #tpu.memory_space<vmem>>, %arg8: memref<1x1x64x1xi32, #tpu.memory_space<vmem>>, %arg9: memref<1x1x1x64xi32, #tpu.memory_space<vmem>>, %arg10: memref<1x1x1x64xi32, #tpu.memory_space<vmem>>, %arg11: memref<1x1x64x16xbf16, #tpu.memory_space<vmem>>, %arg12: memref<1x1x64x1xf32, #tpu.memory_space<vmem>>) attributes {dimension_semantics = [#tpu.dimension_semantics<parallel>, #tpu.dimension_semantics<parallel>], iteration_bounds = array<i64: 4, 2>, scalar_prefetch = 1 : i64, scratch_operands = 0 : i64, tpu.core_type = #tpu.core_type<tc>, window_params = [{transform_indices = @transform_0, window_bounds = array<i64: 1, 1, 64, 16>}, {transform_indices = @transform_1, window_bounds = array<i64: 1, 1, 64, 16>}, {transform_indices = @transform_2, window_bounds = array<i64: 1, 1, 64, 16>}, {transform_indices = @transform_3, window_bounds = array<i64: 1, 1, 64, 16>}, {transform_indices = @transform_4, window_bounds = array<i64: 1, 1, 64, 16>}, {transform_indices = @transform_5, window_bounds = array<i64: 1, 1, 64, 1>}, {transform_indices = @transform_6, window_bounds = array<i64: 1, 1, 1, 64>}, {transform_indices = @transform_7, window_bounds = array<i64: 1, 1, 1, 64>}, {transform_indices = @transform_8, window_bounds = array<i64: 1, 1, 64, 16>}, {transform_indices = @transform_9, window_bounds = array<i64: 1, 1, 64, 1>}]} {
    %c0 = arith.constant 0 : index
    %0 = memref.load %arg2[%c0] : memref<1xi32, #tpu.memory_space<smem>>
    %c0_0 = arith.constant 0 : index
    %c0_1 = arith.constant 0 : index
    %c0_2 = arith.constant 0 : index
    %c0_3 = arith.constant 0 : index
    %1 = vector.load %arg3[%c0_0, %c0_1, %c0_2, %c0_3] : memref<1x1x64x16xbf16, #tpu.memory_space<vmem>>, vector<1x1x64x16xbf16>
    %2 = vector.shape_cast %1 : vector<1x1x64x16xbf16> to vector<1x64x16xbf16>
    %c0_4 = arith.constant 0 : index
    %c0_5 = arith.constant 0 : index
    %c0_6 = arith.constant 0 : index
    %c0_7 = arith.constant 0 : index
    %3 = vector.load %arg4[%c0_4, %c0_5, %c0_6, %c0_7] : memref<1x1x64x16xbf16, #tpu.memory_space<vmem>>, vector<1x1x64x16xbf16>
    %4 = vector.shape_cast %3 : vector<1x1x64x16xbf16> to vector<1x64x16xbf16>
    %c0_8 = arith.constant 0 : index
    %c0_9 = arith.constant 0 : index
    %c0_10 = arith.constant 0 : index
    %c0_11 = arith.constant 0 : index
    %5 = vector.load %arg6[%c0_8, %c0_9, %c0_10, %c0_11] : memref<1x1x64x16xbf16, #tpu.memory_space<vmem>>, vector<1x1x64x16xbf16>
    %6 = vector.shape_cast %5 : vector<1x1x64x16xbf16> to vector<1x64x16xbf16>
    %c0_12 = arith.constant 0 : index
    %c0_13 = arith.constant 0 : index
    %c0_14 = arith.constant 0 : index
    %c0_15 = arith.constant 0 : index
    %7 = vector.load %arg8[%c0_12, %c0_13, %c0_14, %c0_15] : memref<1x1x64x1xi32, #tpu.memory_space<vmem>>, vector<1x1x64x1xi32>
    %8 = vector.shape_cast %7 : vector<1x1x64x1xi32> to vector<1x64x1xi32>
    %c0_16 = arith.constant 0 : index
    %c0_17 = arith.constant 0 : index
    %c0_18 = arith.constant 0 : index
    %c0_19 = arith.constant 0 : index
    %9 = vector.load %arg9[%c0_16, %c0_17, %c0_18, %c0_19] : memref<1x1x1x64xi32, #tpu.memory_space<vmem>>, vector<1x1x1x64xi32>
    %10 = vector.shape_cast %9 : vector<1x1x1x64xi32> to vector<1x1x64xi32>
    %c0_20 = arith.constant 0 : index
    %c0_21 = arith.constant 0 : index
    %c0_22 = arith.constant 0 : index
    %c0_23 = arith.constant 0 : index
    %11 = vector.load %arg5[%c0_20, %c0_21, %c0_22, %c0_23] : memref<1x1x64x16xbf16, #tpu.memory_space<vmem>>, vector<1x1x64x16xbf16>
    %12 = vector.shape_cast %11 : vector<1x1x64x16xbf16> to vector<1x64x16xbf16>
    %c0_24 = arith.constant 0 : index
    %c0_25 = arith.constant 0 : index
    %c0_26 = arith.constant 0 : index
    %c0_27 = arith.constant 0 : index
    %13 = vector.load %arg7[%c0_24, %c0_25, %c0_26, %c0_27] : memref<1x1x64x16xbf16, #tpu.memory_space<vmem>>, vector<1x1x64x16xbf16>
    %14 = vector.shape_cast %13 : vector<1x1x64x16xbf16> to vector<1x64x16xbf16>
    %c0_28 = arith.constant 0 : index
    %c0_29 = arith.constant 0 : index
    %c0_30 = arith.constant 0 : index
    %c0_31 = arith.constant 0 : index
    %15 = vector.load %arg10[%c0_28, %c0_29, %c0_30, %c0_31] : memref<1x1x1x64xi32, #tpu.memory_space<vmem>>, vector<1x1x1x64xi32>
    %16 = vector.shape_cast %15 : vector<1x1x1x64xi32> to vector<1x1x64xi32>
    "tpu.trace_start"() <{level = 10 : i32, message = "gie,gje->gij"}> : () -> ()
    %cst = arith.constant dense<0.000000e+00> : vector<1x64x64xf32>
    %17 = tpu.matmul %2, %4, %cst {dimension_numbers = #tpu.dot_dimension_numbers<[2], [2], [1], [1], [0, 0, 0, 1, 1, 1], [0], [0]>} : vector<1x64x16xbf16>, vector<1x64x16xbf16>, vector<1x64x64xf32> -> vector<1x64x64xf32>
    "tpu.trace_stop"() : () -> ()
    %cst_32 = arith.constant 2.500000e-01 : f32
    %18 = vector.broadcast %cst_32 : f32 to vector<1x64x64xf32>
    %19 = arith.mulf %17, %18 : vector<1x64x64xf32>
    %20 = vector.broadcast %0 : i32 to vector<1x1x64xi32>
    %21 = arith.cmpi sge, %10, %20 : vector<1x1x64xi32>
    %cst_33 = arith.constant -3.40282347E+38 : f32
    %22 = vector.shape_cast %21 : vector<1x1x64xi1> to vector<1x1x64xi1>
    %23 = vector.broadcast %22 : vector<1x1x64xi1> to vector<1x64x64xi1>
    %24 = vector.broadcast %cst_33 : f32 to vector<1x64x64xf32>
    %25 = arith.select %23, %24, %19 : vector<1x64x64xi1>, vector<1x64x64xf32>
    %26 = vector.broadcast %8 : vector<1x64x1xi32> to vector<1x64x64xi32>
    %27 = vector.broadcast %10 : vector<1x1x64xi32> to vector<1x64x64xi32>
    %28 = arith.cmpi eq, %26, %27 : vector<1x64x64xi32>
    %cst_34 = arith.constant -5.000000e+04 : f32
    %29 = vector.broadcast %cst_34 : f32 to vector<1x64x64xf32>
    %30 = arith.select %28, %29, %25 : vector<1x64x64xi1>, vector<1x64x64xf32>
    "tpu.trace_start"() <{level = 10 : i32, message = "gie,gje->gij"}> : () -> ()
    %cst_35 = arith.constant dense<0.000000e+00> : vector<1x64x64xf32>
    %31 = tpu.matmul %2, %12, %cst_35 {dimension_numbers = #tpu.dot_dimension_numbers<[2], [2], [1], [1], [0, 0, 0, 1, 1, 1], [0], [0]>} : vector<1x64x16xbf16>, vector<1x64x16xbf16>, vector<1x64x64xf32> -> vector<1x64x64xf32>
    "tpu.trace_stop"() : () -> ()
    %cst_36 = arith.constant 2.500000e-01 : f32
    %32 = vector.broadcast %cst_36 : f32 to vector<1x64x64xf32>
    %33 = arith.mulf %31, %32 : vector<1x64x64xf32>
    %34 = vector.broadcast %0 : i32 to vector<1x1x64xi32>
    %35 = arith.cmpi sge, %16, %34 : vector<1x1x64xi32>
    %cst_37 = arith.constant -3.40282347E+38 : f32
    %36 = vector.shape_cast %35 : vector<1x1x64xi1> to vector<1x1x64xi1>
    %37 = vector.broadcast %36 : vector<1x1x64xi1> to vector<1x64x64xi1>
    %38 = vector.broadcast %cst_37 : f32 to vector<1x64x64xf32>
    %39 = arith.select %37, %38, %33 : vector<1x64x64xi1>, vector<1x64x64xf32>
    %40 = vector.broadcast %8 : vector<1x64x1xi32> to vector<1x64x64xi32>
    %41 = vector.broadcast %16 : vector<1x1x64xi32> to vector<1x64x64xi32>
    %42 = arith.cmpi eq, %40, %41 : vector<1x64x64xi32>
    %cst_38 = arith.constant -5.000000e+04 : f32
    %43 = vector.broadcast %cst_38 : f32 to vector<1x64x64xf32>
    %44 = arith.select %42, %43, %39 : vector<1x64x64xi1>, vector<1x64x64xf32>
    %cst_39 = arith.constant dense<0xFF800000> : vector<1x64xf32>
    %45 = vector.multi_reduction <maximumf>, %30, %cst_39 [2] : vector<1x64x64xf32> to vector<1x64xf32>
    %46 = vector.shape_cast %45 : vector<1x64xf32> to vector<1x64x1xf32>
    %cst_40 = arith.constant dense<0xFF800000> : vector<1x64xf32>
    %47 = vector.multi_reduction <maximumf>, %44, %cst_40 [2] : vector<1x64x64xf32> to vector<1x64xf32>
    %48 = vector.shape_cast %47 : vector<1x64xf32> to vector<1x64x1xf32>
    %49 = arith.maximumf %46, %48 : vector<1x64x1xf32>
    %50 = vector.broadcast %49 : vector<1x64x1xf32> to vector<1x64x64xf32>
    %51 = arith.subf %30, %50 : vector<1x64x64xf32>
    %52 = math.exp %51 : vector<1x64x64xf32>
    %53 = vector.broadcast %49 : vector<1x64x1xf32> to vector<1x64x64xf32>
    %54 = arith.subf %44, %53 : vector<1x64x64xf32>
    %55 = math.exp %54 : vector<1x64x64xf32>
    %cst_41 = arith.constant dense<0.000000e+00> : vector<1x64xf32>
    %56 = vector.multi_reduction <add>, %52, %cst_41 [2] : vector<1x64x64xf32> to vector<1x64xf32>
    %57 = vector.shape_cast %56 : vector<1x64xf32> to vector<1x64x1xf32>
    %cst_42 = arith.constant dense<0.000000e+00> : vector<1x64xf32>
    %58 = vector.multi_reduction <add>, %55, %cst_42 [2] : vector<1x64x64xf32> to vector<1x64xf32>
    %59 = vector.shape_cast %58 : vector<1x64xf32> to vector<1x64x1xf32>
    %60 = arith.addf %57, %59 : vector<1x64x1xf32>
    %61 = math.log %60 : vector<1x64x1xf32>
    %62 = arith.addf %49, %61 : vector<1x64x1xf32>
    %c0_43 = arith.constant 0 : index
    %c0_44 = arith.constant 0 : index
    %c0_45 = arith.constant 0 : index
    %c0_46 = arith.constant 0 : index
    %63 = vector.load %arg12[%c0_43, %c0_44, %c0_45, %c0_46] : memref<1x1x64x1xf32, #tpu.memory_space<vmem>>, vector<1x1x64x1xf32>
    %64 = vector.shape_cast %63 : vector<1x1x64x1xf32> to vector<1x64x1xf32>
    %65 = vector.shape_cast %62 : vector<1x64x1xf32> to vector<1x1x64x1xf32>
    tpu.vector_store %arg12[%c0_43, %c0_44, %c0_45, %c0_46], %65 {strides = array<i32>} : memref<1x1x64x1xf32, #tpu.memory_space<vmem>>, vector<1x1x64x1xf32>,
    %66 = arith.truncf %52 : vector<1x64x64xf32> to vector<1x64x64xbf16>
    "tpu.trace_start"() <{level = 10 : i32, message = "gij,gjd->gid"}> : () -> ()
    %cst_47 = arith.constant dense<0.000000e+00> : vector<1x64x16xf32>
    %67 = tpu.matmul %66, %6, %cst_47 {dimension_numbers = #tpu.dot_dimension_numbers<[2], [1], [1], [2], [0, 0, 0, 1, 1, 2], [0], [0]>} : vector<1x64x64xbf16>, vector<1x64x16xbf16>, vector<1x64x16xf32> -> vector<1x64x16xf32>
    "tpu.trace_stop"() : () -> ()
    %68 = arith.truncf %55 : vector<1x64x64xf32> to vector<1x64x64xbf16>
    "tpu.trace_start"() <{level = 10 : i32, message = "gij,gjd->gid"}> : () -> ()
    %cst_48 = arith.constant dense<0.000000e+00> : vector<1x64x16xf32>
    %69 = tpu.matmul %68, %14, %cst_48 {dimension_numbers = #tpu.dot_dimension_numbers<[2], [1], [1], [2], [0, 0, 0, 1, 1, 2], [0], [0]>} : vector<1x64x64xbf16>, vector<1x64x16xbf16>, vector<1x64x16xf32> -> vector<1x64x16xf32>
    "tpu.trace_stop"() : () -> ()
    %70 = arith.addf %67, %69 : vector<1x64x16xf32>
    %71 = tpu.reciprocal %60 : vector<1x64x1xf32> -> vector<1x64x1xf32>
    %72 = vector.broadcast %71 : vector<1x64x1xf32> to vector<1x64x16xf32>
    %73 = arith.mulf %70, %72 : vector<1x64x16xf32>
    %74 = arith.truncf %73 : vector<1x64x16xf32> to vector<1x64x16xbf16>
    %c0_49 = arith.constant 0 : index
    %c0_50 = arith.constant 0 : index
    %c0_51 = arith.constant 0 : index
    %c0_52 = arith.constant 0 : index
    %75 = vector.load %arg11[%c0_49, %c0_50, %c0_51, %c0_52] : memref<1x1x64x16xbf16, #tpu.memory_space<vmem>>, vector<1x1x64x16xbf16>
    %76 = vector.shape_cast %75 : vector<1x1x64x16xbf16> to vector<1x64x16xbf16>
    %77 = vector.shape_cast %74 : vector<1x64x16xbf16> to vector<1x1x64x16xbf16>
    tpu.vector_store %arg11[%c0_49, %c0_50, %c0_51, %c0_52], %77 {strides = array<i32>} : memref<1x1x64x16xbf16, #tpu.memory_space<vmem>>, vector<1x1x64x16xbf16>,
    return
  }
  func.func @transform_0(%arg0: i32, %arg1: i32, %arg2: memref<1xi32, #tpu.memory_space<smem>>) -> (i32, i32, i32, i32) {
    %c0_i32 = arith.constant 0 : i32
    %c0_i32_0 = arith.constant 0 : i32
    %c0_i32_1 = arith.constant 0 : i32
    return %arg0, %arg1, %c0_i32, %c0_i32_0 : i32, i32, i32, i32
  }
  func.func @transform_1(%arg0: i32, %arg1: i32, %arg2: memref<1xi32, #tpu.memory_space<smem>>) -> (i32, i32, i32, i32) {
    %c0_i32 = arith.constant 0 : i32
    %c0_i32_0 = arith.constant 0 : i32
    %c0_i32_1 = arith.constant 0 : i32
    return %arg0, %arg1, %c0_i32, %c0_i32_0 : i32, i32, i32, i32
  }
  func.func @transform_2(%arg0: i32, %arg1: i32, %arg2: memref<1xi32, #tpu.memory_space<smem>>) -> (i32, i32, i32, i32) {
    %c1_i32 = arith.constant 1 : i32
    %0 = arith.muli %arg1, %c1_i32 : i32
    %c2_i32 = arith.constant 2 : i32
    %1 = arith.addi %0, %c2_i32 : i32
    %c1_i32_0 = arith.constant 1 : i32
    %2 = arith.subi %1, %c1_i32_0 : i32
    %c2_i32_1 = arith.constant 2 : i32
    %c0_i32 = arith.constant 0 : i32
    %3 = arith.cmpi eq, %c2_i32_1, %c0_i32 : i32
    %c1_i32_2 = arith.constant 1 : i32
    %4 = arith.select %3, %c1_i32_2, %c2_i32_1 : i32
    %5 = arith.remsi %2, %4 : i32
    %c0_i32_3 = arith.constant 0 : i32
    %6 = arith.cmpi ne, %5, %c0_i32_3 : i32
    %c0_i32_4 = arith.constant 0 : i32
    %7 = arith.cmpi slt, %5, %c0_i32_4 : i32
    %c0_i32_5 = arith.constant 0 : i32
    %8 = arith.cmpi slt, %4, %c0_i32_5 : i32
    %9 = arith.xori %7, %8 : i1
    %10 = arith.andi %9, %6 : i1
    %11 = arith.addi %5, %4 : i32
    %12 = arith.select %10, %11, %5 : i32
    %c0_i32_6 = arith.constant 0 : i32
    %c0_i32_7 = arith.constant 0 : i32
    %c0_i32_8 = arith.constant 0 : i32
    return %arg0, %12, %c0_i32_6, %c0_i32_7 : i32, i32, i32, i32
  }
  func.func @transform_3(%arg0: i32, %arg1: i32, %arg2: memref<1xi32, #tpu.memory_space<smem>>) -> (i32, i32, i32, i32) {
    %c0_i32 = arith.constant 0 : i32
    %c0_i32_0 = arith.constant 0 : i32
    %c0_i32_1 = arith.constant 0 : i32
    return %arg0, %arg1, %c0_i32, %c0_i32_0 : i32, i32, i32, i32
  }
  func.func @transform_4(%arg0: i32, %arg1: i32, %arg2: memref<1xi32, #tpu.memory_space<smem>>) -> (i32, i32, i32, i32) {
    %c1_i32 = arith.constant 1 : i32
    %0 = arith.muli %arg1, %c1_i32 : i32
    %c2_i32 = arith.constant 2 : i32
    %1 = arith.addi %0, %c2_i32 : i32
    %c1_i32_0 = arith.constant 1 : i32
    %2 = arith.subi %1, %c1_i32_0 : i32
    %c2_i32_1 = arith.constant 2 : i32
    %c0_i32 = arith.constant 0 : i32
    %3 = arith.cmpi eq, %c2_i32_1, %c0_i32 : i32
    %c1_i32_2 = arith.constant 1 : i32
    %4 = arith.select %3, %c1_i32_2, %c2_i32_1 : i32
    %5 = arith.remsi %2, %4 : i32
    %c0_i32_3 = arith.constant 0 : i32
    %6 = arith.cmpi ne, %5, %c0_i32_3 : i32
    %c0_i32_4 = arith.constant 0 : i32
    %7 = arith.cmpi slt, %5, %c0_i32_4 : i32
    %c0_i32_5 = arith.constant 0 : i32
    %8 = arith.cmpi slt, %4, %c0_i32_5 : i32
    %9 = arith.xori %7, %8 : i1
    %10 = arith.andi %9, %6 : i1
    %11 = arith.addi %5, %4 : i32
    %12 = arith.select %10, %11, %5 : i32
    %c0_i32_6 = arith.constant 0 : i32
    %c0_i32_7 = arith.constant 0 : i32
    %c0_i32_8 = arith.constant 0 : i32
    return %arg0, %12, %c0_i32_6, %c0_i32_7 : i32, i32, i32, i32
  }
  func.func @transform_5(%arg0: i32, %arg1: i32, %arg2: memref<1xi32, #tpu.memory_space<smem>>) -> (i32, i32, i32, i32) {
    %c0_i32 = arith.constant 0 : i32
    %c0_i32_0 = arith.constant 0 : i32
    %c0_i32_1 = arith.constant 0 : i32
    return %arg0, %arg1, %c0_i32, %c0_i32_0 : i32, i32, i32, i32
  }
  func.func @transform_6(%arg0: i32, %arg1: i32, %arg2: memref<1xi32, #tpu.memory_space<smem>>) -> (i32, i32, i32, i32) {
    %c0_i32 = arith.constant 0 : i32
    %c0_i32_0 = arith.constant 0 : i32
    %c0_i32_1 = arith.constant 0 : i32
    return %arg0, %arg1, %c0_i32, %c0_i32_0 : i32, i32, i32, i32
  }
  func.func @transform_7(%arg0: i32, %arg1: i32, %arg2: memref<1xi32, #tpu.memory_space<smem>>) -> (i32, i32, i32, i32) {
    %c1_i32 = arith.constant 1 : i32
    %0 = arith.muli %arg1, %c1_i32 : i32
    %c2_i32 = arith.constant 2 : i32
    %1 = arith.addi %0, %c2_i32 : i32
    %c1_i32_0 = arith.constant 1 : i32
    %2 = arith.subi %1, %c1_i32_0 : i32
    %c2_i32_1 = arith.constant 2 : i32
    %c0_i32 = arith.constant 0 : i32
    %3 = arith.cmpi eq, %c2_i32_1, %c0_i32 : i32
    %c1_i32_2 = arith.constant 1 : i32
    %4 = arith.select %3, %c1_i32_2, %c2_i32_1 : i32
    %5 = arith.remsi %2, %4 : i32
    %c0_i32_3 = arith.constant 0 : i32
    %6 = arith.cmpi ne, %5, %c0_i32_3 : i32
    %c0_i32_4 = arith.constant 0 : i32
    %7 = arith.cmpi slt, %5, %c0_i32_4 : i32
    %c0_i32_5 = arith.constant 0 : i32
    %8 = arith.cmpi slt, %4, %c0_i32_5 : i32
    %9 = arith.xori %7, %8 : i1
    %10 = arith.andi %9, %6 : i1
    %11 = arith.addi %5, %4 : i32
    %12 = arith.select %10, %11, %5 : i32
    %c0_i32_6 = arith.constant 0 : i32
    %c0_i32_7 = arith.constant 0 : i32
    %c0_i32_8 = arith.constant 0 : i32
    return %arg0, %12, %c0_i32_6, %c0_i32_7 : i32, i32, i32, i32
  }
  func.func @transform_8(%arg0: i32, %arg1: i32, %arg2: memref<1xi32, #tpu.memory_space<smem>>) -> (i32, i32, i32, i32) {
    %c0_i32 = arith.constant 0 : i32
    %c0_i32_0 = arith.constant 0 : i32
    %c0_i32_1 = arith.constant 0 : i32
    return %arg0, %arg1, %c0_i32, %c0_i32_0 : i32, i32, i32, i32
  }
  func.func @transform_9(%arg0: i32, %arg1: i32, %arg2: memref<1xi32, #tpu.memory_space<smem>>) -> (i32, i32, i32, i32) {
    %c0_i32 = arith.constant 0 : i32
    %c0_i32_0 = arith.constant 0 : i32
    %c0_i32_1 = arith.constant 0 : i32
    return %arg0, %arg1, %c0_i32, %c0_i32_0 : i32, i32, i32, i32
  }
}

</mosaic_0001>

<llo_original>
// kernel: tpu_custom_call.1
$region0: #{tpu_custom_call.1}
  #allocation0 [shape = 'u32[]', space=smem, size = 0x4, offset = 0x4, fixed_abs, tag = 'smem constant byte address 0x4 - core index']
  #allocation1 [shape = 'u32[144,128]{1,0:T(1,128)}', space=vmem, size = 0x12000, scoped, tag = 'internal scratch']
  #allocation2 [shape = 's32[1]{0}', space=sflag, size = 0x4, scoped, tag = 'scoped memory for tpu_custom_call.1']
  #allocation3 [shape = 's32[1]{0:T(128)S(6)}', space=smem, size = 0x200, scoped, tag = 'prefetched SMEM operand 0']
  %s0 = inlined_call_operand.<no memory space> [shape: s32[1], index: 0, kind: input, shape index: {}]
  %s1 = inlined_call_operand.vmem [shape: bf16[4,2,64,16], index: 1, kind: input, shape index: {}]
  %s2 = inlined_call_operand.vmem [shape: bf16[4,2,64,16], index: 2, kind: input, shape index: {}]
  %s3 = inlined_call_operand.vmem [shape: bf16[4,2,64,16], index: 3, kind: input, shape index: {}]
  %s4 = inlined_call_operand.vmem [shape: bf16[4,2,64,16], index: 4, kind: input, shape index: {}]
  %s5 = inlined_call_operand.vmem [shape: bf16[4,2,64,16], index: 5, kind: input, shape index: {}]
  %s6 = inlined_call_operand.vmem [shape: s32[4,2,64,1], index: 6, kind: input, shape index: {}]
  %s7 = inlined_call_operand.vmem [shape: s32[4,2,1,64], index: 7, kind: input, shape index: {}]
  %s8 = inlined_call_operand.vmem [shape: s32[4,2,1,64], index: 8, kind: input, shape index: {}]
  %s9 = inlined_call_operand.vmem [shape: bf16[4,2,64,16], index: 9, kind: output, shape index: {0}]
  %s10 = inlined_call_operand.vmem [shape: f32[4,2,64,1], index: 10, kind: output, shape index: {1}]
  %11 = xla_tuple %s9, %s10
  %s12 = sld [smem:[#allocation0]]
  $region73: #{tpu_custom_call.1} parent=0
    _
  %s14 = ssub.s32 1, %s12
  %s15 = scalar_select 0, %s14, %s12
  %16 = sst [smem:[#allocation3]] %s0
  loop: start=0, step=1, limit=10
  $region2: #{tpu_custom_call.1} parent=0 // loop_pre_header
    _
  $region3: #{tpu_custom_call.1} parent=0 // loop_header
    %s18 = sphi 0, %s22
    %p19 = scmp.ge.s32.totalorder %s18, 10
    %s25 = sphi 0, %s37
    %s26 = sphi 0, %s33
    %s27 = sphi 0, %s25
    %s28 = sphi 0, %s26
    %s29 = sphi 0, %s27
    %s30 = sphi 0, %s28
    %s42 = sphi 0, %s44
    %s45 = sphi 0, %s42
    %s46 = sphi 0, %s45
    %s62 = sphi 0, %s46
    %s70 = sphi 0, %s72
    %s73 = sphi 0, %s70
    %s74 = sphi 0, %s73
    %s90 = sphi 0, %s74
    %s124 = sphi 0, %s126
    %s127 = sphi 0, %s124
    %s128 = sphi 0, %s127
    %s144 = sphi 0, %s128
    %s152 = sphi 0, %s154
    %s155 = sphi 0, %s152
    %s156 = sphi 0, %s155
    %s172 = sphi 0, %s156
    %s206 = sphi 0, %s208
    %s209 = sphi 0, %s206
    %s210 = sphi 0, %s209
    %s226 = sphi 0, %s210
    %s234 = sphi 0, %s236
    %s237 = sphi 0, %s234
    %s238 = sphi 0, %s237
    %s254 = sphi 0, %s238
    %s262 = sphi 0, %s264
    %s265 = sphi 0, %s262
    %s266 = sphi 0, %s265
    %s282 = sphi 0, %s266
    %s316 = sphi 0, %s318
    %s319 = sphi 0, %s316
    %s320 = sphi 0, %s319
    %s336 = sphi 0, %s320
    %s344 = sphi 0, %s346
    %s347 = sphi 0, %s344
    %s348 = sphi 0, %s347
    %s364 = sphi 0, %s348
    %s372 = sphi 0, %s374
    %s375 = sphi 0, %s372
    %s376 = sphi 0, %s375
    %s392 = sphi 0, %s376
  $region4: #{tpu_custom_call.1} parent=0 // loop_header_branch
    %21 = sbr.rel (%p19) target = $region8
  $region5: #{tpu_custom_call.1} parent=0 // loop_body
    %s23 = ssub.s32 %s18, 1
    %s24 = ssub.s32 %s18, 2
    %s31 = sadd.s32 1, %s26
    %p32 = scmp.ge.s32.totalorder %s31, 2
    %s33 = scalar_select %p32, 0, %s31
    %s34 = sadd.s32 1, %s25
    %s35 = scalar_select %p32, %s34, %s25
    %p36 = scmp.ge.s32.totalorder %s35, 4
    %s37 = scalar_select %p36, 0, %s35
    %s38 = ssub.s32 %s25, %s37
    %s39 = ssub.s32 %s26, %s33
    %s40 = sor.u32 %s38, %s39
    %p41 = scmp.eq.s32.totalorder %s40, 0
    %s43 = sadd.s32 %s42, 1
    %s44 = scalar_select %p41, %s42, %s43
    %p47 = pneg %p41
    %p48 = scmp.eq.s32.totalorder %s18, 7
    %p49 = por %p47, %p48
    %p50 = scmp.ne.s32.totalorder %s42, %s45
    %p51 = scmp.eq.s32.totalorder %s18, 0
    %p52 = por %p50, %p51
    %p53 = scmp.ne.s32.totalorder %s42, %s45
    %p54 = scmp.eq.s32.totalorder %s23, 7
    %p55 = por %p53, %p54
    %p56 = scmp.ne.s32.totalorder %s45, %s46
    %p57 = scmp.eq.s32.totalorder %s23, 0
    %p58 = por %p56, %p57
    %p59 = scmp.ne.s32.totalorder %s45, %s46
    %p60 = scmp.eq.s32.totalorder %s24, 7
    %p61 = por %p59, %p60
    %p63 = scmp.ne.s32.totalorder %s46, %s62
    %p64 = scmp.eq.s32.totalorder %s24, 0
    %p65 = por %p63, %p64
    %s66 = ssub.s32 %s25, %s37
    %s67 = ssub.s32 %s26, %s33
    %s68 = sor.u32 %s66, %s67
    %p69 = scmp.eq.s32.totalorder %s68, 0
    %s71 = sadd.s32 %s70, 1
    %s72 = scalar_select %p69, %s70, %s71
    %p75 = pneg %p69
    %p76 = scmp.eq.s32.totalorder %s18, 7
    %p77 = por %p75, %p76
    %p78 = scmp.ne.s32.totalorder %s70, %s73
    %p79 = scmp.eq.s32.totalorder %s18, 0
    %p80 = por %p78, %p79
    %p81 = scmp.ne.s32.totalorder %s70, %s73
    %p82 = scmp.eq.s32.totalorder %s23, 7
    %p83 = por %p81, %p82
    %p84 = scmp.ne.s32.totalorder %s73, %s74
    %p85 = scmp.eq.s32.totalorder %s23, 0
    %p86 = por %p84, %p85
    %p87 = scmp.ne.s32.totalorder %s73, %s74
    %p88 = scmp.eq.s32.totalorder %s24, 7
    %p89 = por %p87, %p88
    %p91 = scmp.ne.s32.totalorder %s74, %s90
    %p92 = scmp.eq.s32.totalorder %s24, 0
    %p93 = por %p91, %p92
    %s94 = sadd.s32 %s26, 1
    %p95 = scmp.lt.s32.totalorder %s94, 0
    %s96 = ssub.s32 0, %s94
    %s97 = scalar_select %p95, %s96, %s94
    %s98 = sand.u32 %s97, 1
    %s99 = ssub.s32 0, %s98
    %s100 = scalar_select %p95, %s99, %s98
    %p101 = scmp.ne.s32.totalorder %s100, 0
    %p102 = scmp.lt.s32.totalorder %s100, 0
    %p103 = pnand %p102, %p101
    %p104 = pneg %p103
    %s105 = sadd.s32 %s100, 2
    %s106 = scalar_select %p104, %s105, %s100
    %s107 = sadd.s32 %s33, 1
    %p108 = scmp.lt.s32.totalorder %s107, 0
    %s109 = ssub.s32 0, %s107
    %s110 = scalar_select %p108, %s109, %s107
    %s111 = sand.u32 %s110, 1
    %s112 = ssub.s32 0, %s111
    %s113 = scalar_select %p108, %s112, %s111
    %p114 = scmp.ne.s32.totalorder %s113, 0
    %p115 = scmp.lt.s32.totalorder %s113, 0
    %p116 = pnand %p115, %p114
    %p117 = pneg %p116
    %s118 = sadd.s32 %s113, 2
    %s119 = scalar_select %p117, %s118, %s113
    %s120 = ssub.s32 %s25, %s37
    %s121 = ssub.s32 %s106, %s119
    %s122 = sor.u32 %s120, %s121
    %p123 = scmp.eq.s32.totalorder %s122, 0
    %s125 = sadd.s32 %s124, 1
    %s126 = scalar_select %p123, %s124, %s125
    %p129 = pneg %p123
    %p130 = scmp.eq.s32.totalorder %s18, 7
    %p131 = por %p129, %p130
    %p132 = scmp.ne.s32.totalorder %s124, %s127
    %p133 = scmp.eq.s32.totalorder %s18, 0
    %p134 = por %p132, %p133
    %p135 = scmp.ne.s32.totalorder %s124, %s127
    %p136 = scmp.eq.s32.totalorder %s23, 7
    %p137 = por %p135, %p136
    %p138 = scmp.ne.s32.totalorder %s127, %s128
    %p139 = scmp.eq.s32.totalorder %s23, 0
    %p140 = por %p138, %p139
    %p141 = scmp.ne.s32.totalorder %s127, %s128
    %p142 = scmp.eq.s32.totalorder %s24, 7
    %p143 = por %p141, %p142
    %p145 = scmp.ne.s32.totalorder %s128, %s144
    %p146 = scmp.eq.s32.totalorder %s24, 0
    %p147 = por %p145, %p146
    %s148 = ssub.s32 %s25, %s37
    %s149 = ssub.s32 %s26, %s33
    %s150 = sor.u32 %s148, %s149
    %p151 = scmp.eq.s32.totalorder %s150, 0
    %s153 = sadd.s32 %s152, 1
    %s154 = scalar_select %p151, %s152, %s153
    %p157 = pneg %p151
    %p158 = scmp.eq.s32.totalorder %s18, 7
    %p159 = por %p157, %p158
    %p160 = scmp.ne.s32.totalorder %s152, %s155
    %p161 = scmp.eq.s32.totalorder %s18, 0
    %p162 = por %p160, %p161
    %p163 = scmp.ne.s32.totalorder %s152, %s155
    %p164 = scmp.eq.s32.totalorder %s23, 7
    %p165 = por %p163, %p164
    %p166 = scmp.ne.s32.totalorder %s155, %s156
    %p167 = scmp.eq.s32.totalorder %s23, 0
    %p168 = por %p166, %p167
    %p169 = scmp.ne.s32.totalorder %s155, %s156
    %p170 = scmp.eq.s32.totalorder %s24, 7
    %p171 = por %p169, %p170
    %p173 = scmp.ne.s32.totalorder %s156, %s172
    %p174 = scmp.eq.s32.totalorder %s24, 0
    %p175 = por %p173, %p174
    %s176 = sadd.s32 %s26, 1
    %p177 = scmp.lt.s32.totalorder %s176, 0
    %s178 = ssub.s32 0, %s176
    %s179 = scalar_select %p177, %s178, %s176
    %s180 = sand.u32 %s179, 1
    %s181 = ssub.s32 0, %s180
    %s182 = scalar_select %p177, %s181, %s180
    %p183 = scmp.ne.s32.totalorder %s182, 0
    %p184 = scmp.lt.s32.totalorder %s182, 0
    %p185 = pnand %p184, %p183
    %p186 = pneg %p185
    %s187 = sadd.s32 %s182, 2
    %s188 = scalar_select %p186, %s187, %s182
    %s189 = sadd.s32 %s33, 1
    %p190 = scmp.lt.s32.totalorder %s189, 0
    %s191 = ssub.s32 0, %s189
    %s192 = scalar_select %p190, %s191, %s189
    %s193 = sand.u32 %s192, 1
    %s194 = ssub.s32 0, %s193
    %s195 = scalar_select %p190, %s194, %s193
    %p196 = scmp.ne.s32.totalorder %s195, 0
    %p197 = scmp.lt.s32.totalorder %s195, 0
    %p198 = pnand %p197, %p196
    %p199 = pneg %p198
    %s200 = sadd.s32 %s195, 2
    %s201 = scalar_select %p199, %s200, %s195
    %s202 = ssub.s32 %s25, %s37
    %s203 = ssub.s32 %s188, %s201
    %s204 = sor.u32 %s202, %s203
    %p205 = scmp.eq.s32.totalorder %s204, 0
    %s207 = sadd.s32 %s206, 1
    %s208 = scalar_select %p205, %s206, %s207
    %p211 = pneg %p205
    %p212 = scmp.eq.s32.totalorder %s18, 7
    %p213 = por %p211, %p212
    %p214 = scmp.ne.s32.totalorder %s206, %s209
    %p215 = scmp.eq.s32.totalorder %s18, 0
    %p216 = por %p214, %p215
    %p217 = scmp.ne.s32.totalorder %s206, %s209
    %p218 = scmp.eq.s32.totalorder %s23, 7
    %p219 = por %p217, %p218
    %p220 = scmp.ne.s32.totalorder %s209, %s210
    %p221 = scmp.eq.s32.totalorder %s23, 0
    %p222 = por %p220, %p221
    %p223 = scmp.ne.s32.totalorder %s209, %s210
    %p224 = scmp.eq.s32.totalorder %s24, 7
    %p225 = por %p223, %p224
    %p227 = scmp.ne.s32.totalorder %s210, %s226
    %p228 = scmp.eq.s32.totalorder %s24, 0
    %p229 = por %p227, %p228
    %s230 = ssub.s32 %s25, %s37
    %s231 = ssub.s32 %s26, %s33
    %s232 = sor.u32 %s230, %s231
    %p233 = scmp.eq.s32.totalorder %s232, 0
    %s235 = sadd.s32 %s234, 1
    %s236 = scalar_select %p233, %s234, %s235
    %p239 = pneg %p233
    %p240 = scmp.eq.s32.totalorder %s18, 7
    %p241 = por %p239, %p240
    %p242 = scmp.ne.s32.totalorder %s234, %s237
    %p243 = scmp.eq.s32.totalorder %s18, 0
    %p244 = por %p242, %p243
    %p245 = scmp.ne.s32.totalorder %s234, %s237
    %p246 = scmp.eq.s32.totalorder %s23, 7
    %p247 = por %p245, %p246
    %p248 = scmp.ne.s32.totalorder %s237, %s238
    %p249 = scmp.eq.s32.totalorder %s23, 0
    %p250 = por %p248, %p249
    %p251 = scmp.ne.s32.totalorder %s237, %s238
    %p252 = scmp.eq.s32.totalorder %s24, 7
    %p253 = por %p251, %p252
    %p255 = scmp.ne.s32.totalorder %s238, %s254
    %p256 = scmp.eq.s32.totalorder %s24, 0
    %p257 = por %p255, %p256
    %s258 = ssub.s32 %s25, %s37
    %s259 = ssub.s32 %s26, %s33
    %s260 = sor.u32 %s258, %s259
    %p261 = scmp.eq.s32.totalorder %s260, 0
    %s263 = sadd.s32 %s262, 1
    %s264 = scalar_select %p261, %s262, %s263
    %p267 = pneg %p261
    %p268 = scmp.eq.s32.totalorder %s18, 7
    %p269 = por %p267, %p268
    %p270 = scmp.ne.s32.totalorder %s262, %s265
    %p271 = scmp.eq.s32.totalorder %s18, 0
    %p272 = por %p270, %p271
    %p273 = scmp.ne.s32.totalorder %s262, %s265
    %p274 = scmp.eq.s32.totalorder %s23, 7
    %p275 = por %p273, %p274
    %p276 = scmp.ne.s32.totalorder %s265, %s266
    %p277 = scmp.eq.s32.totalorder %s23, 0
    %p278 = por %p276, %p277
    %p279 = scmp.ne.s32.totalorder %s265, %s266
    %p280 = scmp.eq.s32.totalorder %s24, 7
    %p281 = por %p279, %p280
    %p283 = scmp.ne.s32.totalorder %s266, %s282
    %p284 = scmp.eq.s32.totalorder %s24, 0
    %p285 = por %p283, %p284
    %s286 = sadd.s32 %s26, 1
    %p287 = scmp.lt.s32.totalorder %s286, 0
    %s288 = ssub.s32 0, %s286
    %s289 = scalar_select %p287, %s288, %s286
    %s290 = sand.u32 %s289, 1
    %s291 = ssub.s32 0, %s290
    %s292 = scalar_select %p287, %s291, %s290
    %p293 = scmp.ne.s32.totalorder %s292, 0
    %p294 = scmp.lt.s32.totalorder %s292, 0
    %p295 = pnand %p294, %p293
    %p296 = pneg %p295
    %s297 = sadd.s32 %s292, 2
    %s298 = scalar_select %p296, %s297, %s292
    %s299 = sadd.s32 %s33, 1
    %p300 = scmp.lt.s32.totalorder %s299, 0
    %s301 = ssub.s32 0, %s299
    %s302 = scalar_select %p300, %s301, %s299
    %s303 = sand.u32 %s302, 1
    %s304 = ssub.s32 0, %s303
    %s305 = scalar_select %p300, %s304, %s303
    %p306 = scmp.ne.s32.totalorder %s305, 0
    %p307 = scmp.lt.s32.totalorder %s305, 0
    %p308 = pnand %p307, %p306
    %p309 = pneg %p308
    %s310 = sadd.s32 %s305, 2
    %s311 = scalar_select %p309, %s310, %s305
    %s312 = ssub.s32 %s25, %s37
    %s313 = ssub.s32 %s298, %s311
    %s314 = sor.u32 %s312, %s313
    %p315 = scmp.eq.s32.totalorder %s314, 0
    %s317 = sadd.s32 %s316, 1
    %s318 = scalar_select %p315, %s316, %s317
    %p321 = pneg %p315
    %p322 = scmp.eq.s32.totalorder %s18, 7
    %p323 = por %p321, %p322
    %p324 = scmp.ne.s32.totalorder %s316, %s319
    %p325 = scmp.eq.s32.totalorder %s18, 0
    %p326 = por %p324, %p325
    %p327 = scmp.ne.s32.totalorder %s316, %s319
    %p328 = scmp.eq.s32.totalorder %s23, 7
    %p329 = por %p327, %p328
    %p330 = scmp.ne.s32.totalorder %s319, %s320
    %p331 = scmp.eq.s32.totalorder %s23, 0
    %p332 = por %p330, %p331
    %p333 = scmp.ne.s32.totalorder %s319, %s320
    %p334 = scmp.eq.s32.totalorder %s24, 7
    %p335 = por %p333, %p334
    %p337 = scmp.ne.s32.totalorder %s320, %s336
    %p338 = scmp.eq.s32.totalorder %s24, 0
    %p339 = por %p337, %p338
    %s340 = ssub.s32 %s25, %s37
    %s341 = ssub.s32 %s26, %s33
    %s342 = sor.u32 %s340, %s341
    %p343 = scmp.eq.s32.totalorder %s342, 0
    %s345 = sadd.s32 %s344, 1
    %s346 = scalar_select %p343, %s344, %s345
    %p349 = pneg %p343
    %p350 = scmp.eq.s32.totalorder %s18, 7
    %p351 = por %p349, %p350
    %p352 = scmp.ne.s32.totalorder %s344, %s347
    %p353 = scmp.eq.s32.totalorder %s18, 0
    %p354 = por %p352, %p353
    %p355 = scmp.ne.s32.totalorder %s344, %s347
    %p356 = scmp.eq.s32.totalorder %s23, 7
    %p357 = por %p355, %p356
    %p358 = scmp.ne.s32.totalorder %s347, %s348
    %p359 = scmp.eq.s32.totalorder %s23, 0
    %p360 = por %p358, %p359
    %p361 = scmp.ne.s32.totalorder %s347, %s348
    %p362 = scmp.eq.s32.totalorder %s24, 7
    %p363 = por %p361, %p362
    %p365 = scmp.ne.s32.totalorder %s348, %s364
    %p366 = scmp.eq.s32.totalorder %s24, 0
    %p367 = por %p365, %p366
    %s368 = ssub.s32 %s25, %s37
    %s369 = ssub.s32 %s26, %s33
    %s370 = sor.u32 %s368, %s369
    %p371 = scmp.eq.s32.totalorder %s370, 0
    %s373 = sadd.s32 %s372, 1
    %s374 = scalar_select %p371, %s372, %s373
    %p377 = pneg %p371
    %p378 = scmp.eq.s32.totalorder %s18, 7
    %p379 = por %p377, %p378
    %p380 = scmp.ne.s32.totalorder %s372, %s375
    %p381 = scmp.eq.s32.totalorder %s18, 0
    %p382 = por %p380, %p381
    %p383 = scmp.ne.s32.totalorder %s372, %s375
    %p384 = scmp.eq.s32.totalorder %s23, 7
    %p385 = por %p383, %p384
    %p386 = scmp.ne.s32.totalorder %s375, %s376
    %p387 = scmp.eq.s32.totalorder %s23, 0
    %p388 = por %p386, %p387
    %p389 = scmp.ne.s32.totalorder %s375, %s376
    %p390 = scmp.eq.s32.totalorder %s24, 7
    %p391 = por %p389, %p390
    %p393 = scmp.ne.s32.totalorder %s376, %s392
    %p394 = scmp.eq.s32.totalorder %s24, 0
    %p395 = por %p393, %p394
    %p396 = scmp.le.s32.totalorder 1, %s18
    %p397 = scmp.lt.s32.totalorder %s18, 9
    %p398 = pnand %p396, %p397
    %p399 = pneg %p398
    // Predicated region
    $region9: #{tpu_custom_call.1} parent=5 // pred_check
      _
    $region10: #{tpu_custom_call.1} parent=5 // pred_check_branch
      %401 = sbr.rel (%p398) target = $region12
    $region11: #{tpu_custom_call.1} parent=5 // pred_region
      %s402 = ssub.s32 %s18, 1
    $region12: #{tpu_custom_call.1} parent=5 // pred_fallthru
      _
    %p403 = scmp.lt.s32.totalorder %s18, 8
    // Predicated region
    $region13: #{tpu_custom_call.1} parent=5 // pred_check
      %p404 = pneg %p403
    $region14: #{tpu_custom_call.1} parent=5 // pred_check_branch
      %406 = sbr.rel (%p404) target = $region16
    $region15: #{tpu_custom_call.1} parent=5 // pred_region
      // Predicated region
      $region17: #{tpu_custom_call.1} parent=15 // pred_check
        %p407 = pneg %p52
      $region18: #{tpu_custom_call.1} parent=15 // pred_check_branch
        %409 = sbr.rel (%p407) target = $region20
      $region19: #{tpu_custom_call.1} parent=15 // pred_region
        %p410 = scmp.lt.s32.totalorder %s25, 3
        %s411 = scalar_select %p410, %s25, 3
        %p412 = scmp.lt.s32.totalorder %s26, 1
        %s413 = scalar_select %p412, %s26, 1
        %s414 = smul.addr %s413, 8
        %s415 = smul.addr %s411, 16
        %s416 = sadd.s32 %s414, %s415
        %s417 = smul.addr %s416, 4
        %s418 = scalar_lea.vmem %s1, %s417
      $region20: #{tpu_custom_call.1} parent=15 // pred_fallthru
        _
      // Predicated region
      $region21: #{tpu_custom_call.1} parent=15 // pred_check
        %p419 = pneg %p80
      $region22: #{tpu_custom_call.1} parent=15 // pred_check_branch
        %421 = sbr.rel (%p419) target = $region24
      $region23: #{tpu_custom_call.1} parent=15 // pred_region
        %p422 = scmp.lt.s32.totalorder %s25, 3
        %s423 = scalar_select %p422, %s25, 3
        %p424 = scmp.lt.s32.totalorder %s26, 1
        %s425 = scalar_select %p424, %s26, 1
        %s426 = smul.addr %s425, 8
        %s427 = smul.addr %s423, 16
        %s428 = sadd.s32 %s426, %s427
        %s429 = smul.addr %s428, 4
        %s430 = scalar_lea.vmem %s2, %s429
      $region24: #{tpu_custom_call.1} parent=15 // pred_fallthru
        _
      // Predicated region
      $region25: #{tpu_custom_call.1} parent=15 // pred_check
        %p431 = pneg %p134
      $region26: #{tpu_custom_call.1} parent=15 // pred_check_branch
        %433 = sbr.rel (%p431) target = $region28
      $region27: #{tpu_custom_call.1} parent=15 // pred_region
        %s434 = sadd.s32 %s26, 1
        %p435 = scmp.lt.s32.totalorder %s434, 0
        %s436 = ssub.s32 0, %s434
        %s437 = scalar_select %p435, %s436, %s434
        %s438 = sand.u32 %s437, 1
        %s439 = ssub.s32 0, %s438
        %s440 = scalar_select %p435, %s439, %s438
        %p441 = scmp.ne.s32.totalorder %s440, 0
        %p442 = scmp.lt.s32.totalorder %s440, 0
        %p443 = pnand %p442, %p441
        %p444 = pneg %p443
        %s445 = sadd.s32 %s440, 2
        %s446 = scalar_select %p444, %s445, %s440
        %p447 = scmp.lt.s32.totalorder %s25, 3
        %s448 = scalar_select %p447, %s25, 3
        %p449 = scmp.lt.s32.totalorder %s446, 1
        %s450 = scalar_select %p449, %s446, 1
        %s451 = smul.addr %s450, 8
        %s452 = smul.addr %s448, 16
        %s453 = sadd.s32 %s451, %s452
        %s454 = smul.addr %s453, 4
        %s455 = scalar_lea.vmem %s3, %s454
        %s456 = sadd.s32 %s26, 1
        %p457 = scmp.lt.s32.totalorder %s456, 0
        %s458 = ssub.s32 0, %s456
        %s459 = scalar_select %p457, %s458, %s456
        %s460 = sand.u32 %s459, 1
        %s461 = ssub.s32 0, %s460
        %s462 = scalar_select %p457, %s461, %s460
        %p463 = scmp.ne.s32.totalorder %s462, 0
        %p464 = scmp.lt.s32.totalorder %s462, 0
        %p465 = pnand %p464, %p463
        %p466 = pneg %p465
        %s467 = sadd.s32 %s462, 2
        %s468 = scalar_select %p466, %s467, %s462
      $region28: #{tpu_custom_call.1} parent=15 // pred_fallthru
        _
      // Predicated region
      $region29: #{tpu_custom_call.1} parent=15 // pred_check
        %p469 = pneg %p162
      $region30: #{tpu_custom_call.1} parent=15 // pred_check_branch
        %471 = sbr.rel (%p469) target = $region32
      $region31: #{tpu_custom_call.1} parent=15 // pred_region
        %p472 = scmp.lt.s32.totalorder %s25, 3
        %s473 = scalar_select %p472, %s25, 3
        %p474 = scmp.lt.s32.totalorder %s26, 1
        %s475 = scalar_select %p474, %s26, 1
        %s476 = smul.addr %s475, 8
        %s477 = smul.addr %s473, 16
        %s478 = sadd.s32 %s476, %s477
        %s479 = smul.addr %s478, 4
        %s480 = scalar_lea.vmem %s4, %s479
      $region32: #{tpu_custom_call.1} parent=15 // pred_fallthru
        _
      // Predicated region
      $region33: #{tpu_custom_call.1} parent=15 // pred_check
        %p481 = pneg %p216
      $region34: #{tpu_custom_call.1} parent=15 // pred_check_branch
        %483 = sbr.rel (%p481) target = $region36
      $region35: #{tpu_custom_call.1} parent=15 // pred_region
        %s484 = sadd.s32 %s26, 1
        %p485 = scmp.lt.s32.totalorder %s484, 0
        %s486 = ssub.s32 0, %s484
        %s487 = scalar_select %p485, %s486, %s484
        %s488 = sand.u32 %s487, 1
        %s489 = ssub.s32 0, %s488
        %s490 = scalar_select %p485, %s489, %s488
        %p491 = scmp.ne.s32.totalorder %s490, 0
        %p492 = scmp.lt.s32.totalorder %s490, 0
        %p493 = pnand %p492, %p491
        %p494 = pneg %p493
        %s495 = sadd.s32 %s490, 2
        %s496 = scalar_select %p494, %s495, %s490
        %p497 = scmp.lt.s32.totalorder %s25, 3
        %s498 = scalar_select %p497, %s25, 3
        %p499 = scmp.lt.s32.totalorder %s496, 1
        %s500 = scalar_select %p499, %s496, 1
        %s501 = smul.addr %s500, 8
        %s502 = smul.addr %s498, 16
        %s503 = sadd.s32 %s501, %s502
        %s504 = smul.addr %s503, 4
        %s505 = scalar_lea.vmem %s5, %s504
        %s506 = sadd.s32 %s26, 1
        %p507 = scmp.lt.s32.totalorder %s506, 0
        %s508 = ssub.s32 0, %s506
        %s509 = scalar_select %p507, %s508, %s506
        %s510 = sand.u32 %s509, 1
        %s511 = ssub.s32 0, %s510
        %s512 = scalar_select %p507, %s511, %s510
        %p513 = scmp.ne.s32.totalorder %s512, 0
        %p514 = scmp.lt.s32.totalorder %s512, 0
        %p515 = pnand %p514, %p513
        %p516 = pneg %p515
        %s517 = sadd.s32 %s512, 2
        %s518 = scalar_select %p516, %s517, %s512
      $region36: #{tpu_custom_call.1} parent=15 // pred_fallthru
        _
      // Predicated region
      $region37: #{tpu_custom_call.1} parent=15 // pred_check
        %p519 = pneg %p244
      $region38: #{tpu_custom_call.1} parent=15 // pred_check_branch
        %521 = sbr.rel (%p519) target = $region40
      $region39: #{tpu_custom_call.1} parent=15 // pred_region
        %p522 = scmp.lt.s32.totalorder %s25, 3
        %s523 = scalar_select %p522, %s25, 3
        %p524 = scmp.lt.s32.totalorder %s26, 1
        %s525 = scalar_select %p524, %s26, 1
        %s526 = smul.addr %s525, 8
        %s527 = smul.addr %s523, 16
        %s528 = sadd.s32 %s526, %s527
        %s529 = smul.addr %s528, 8
        %s530 = scalar_lea.vmem %s6, %s529
      $region40: #{tpu_custom_call.1} parent=15 // pred_fallthru
        _
      // Predicated region
      $region41: #{tpu_custom_call.1} parent=15 // pred_check
        %p531 = pneg %p272
      $region42: #{tpu_custom_call.1} parent=15 // pred_check_branch
        %533 = sbr.rel (%p531) target = $region44
      $region43: #{tpu_custom_call.1} parent=15 // pred_region
        %p534 = scmp.lt.s32.totalorder %s25, 3
        %s535 = scalar_select %p534, %s25, 3
        %p536 = scmp.lt.s32.totalorder %s26, 1
        %s537 = scalar_select %p536, %s26, 1
        %s538 = smul.addr %s535, 2
        %s539 = sadd.s32 %s537, %s538
        %s540 = scalar_lea.vmem %s7, %s539
      $region44: #{tpu_custom_call.1} parent=15 // pred_fallthru
        _
      // Predicated region
      $region45: #{tpu_custom_call.1} parent=15 // pred_check
        %p541 = pneg %p326
      $region46: #{tpu_custom_call.1} parent=15 // pred_check_branch
        %543 = sbr.rel (%p541) target = $region48
      $region47: #{tpu_custom_call.1} parent=15 // pred_region
        %s544 = sadd.s32 %s26, 1
        %p545 = scmp.lt.s32.totalorder %s544, 0
        %s546 = ssub.s32 0, %s544
        %s547 = scalar_select %p545, %s546, %s544
        %s548 = sand.u32 %s547, 1
        %s549 = ssub.s32 0, %s548
        %s550 = scalar_select %p545, %s549, %s548
        %p551 = scmp.ne.s32.totalorder %s550, 0
        %p552 = scmp.lt.s32.totalorder %s550, 0
        %p553 = pnand %p552, %p551
        %p554 = pneg %p553
        %s555 = sadd.s32 %s550, 2
        %s556 = scalar_select %p554, %s555, %s550
        %p557 = scmp.lt.s32.totalorder %s25, 3
        %s558 = scalar_select %p557, %s25, 3
        %p559 = scmp.lt.s32.totalorder %s556, 1
        %s560 = scalar_select %p559, %s556, 1
        %s561 = smul.addr %s558, 2
        %s562 = sadd.s32 %s560, %s561
        %s563 = scalar_lea.vmem %s8, %s562
        %s564 = sadd.s32 %s26, 1
        %p565 = scmp.lt.s32.totalorder %s564, 0
        %s566 = ssub.s32 0, %s564
        %s567 = scalar_select %p565, %s566, %s564
        %s568 = sand.u32 %s567, 1
        %s569 = ssub.s32 0, %s568
        %s570 = scalar_select %p565, %s569, %s568
        %p571 = scmp.ne.s32.totalorder %s570, 0
        %p572 = scmp.lt.s32.totalorder %s570, 0
        %p573 = pnand %p572, %p571
        %p574 = pneg %p573
        %s575 = sadd.s32 %s570, 2
        %s576 = scalar_select %p574, %s575, %s570
      $region48: #{tpu_custom_call.1} parent=15 // pred_fallthru
        _
    $region16: #{tpu_custom_call.1} parent=5 // pred_fallthru
      _
    %p577 = scmp.le.s32.totalorder 1, %s18
    %p578 = scmp.lt.s32.totalorder %s18, 9
    %p579 = pnand %p577, %p578
    %p580 = pneg %p579
    // Predicated region
    $region49: #{tpu_custom_call.1} parent=5 // pred_check
      _
    $region50: #{tpu_custom_call.1} parent=5 // pred_check_branch
      %582 = sbr.rel (%p579) target = $region52
    $region51: #{tpu_custom_call.1} parent=5 // pred_region
      %s583 = ssub.s32 %s18, 1
      %p584 = scmp.lt.s32.totalorder %s27, 3
      %s585 = scalar_select %p584, %s27, 3
      %p586 = scmp.lt.s32.totalorder %s28, 1
      %s587 = scalar_select %p586, %s28, 1
      %s588 = smul.addr %s587, 8
      %s589 = smul.addr %s585, 16
      %s590 = sadd.s32 %s588, %s589
      %s591 = smul.addr %s590, 4
      %s592 = scalar_lea.vmem %s1, %s591
      %p593 = pneg %p58
      %p594 = pneg %p55
      %p595 = scmp.lt.s32.totalorder %s27, 3
      %s596 = scalar_select %p595, %s27, 3
      %p597 = scmp.lt.s32.totalorder %s28, 1
      %s598 = scalar_select %p597, %s28, 1
      %s599 = smul.addr %s598, 8
      %s600 = smul.addr %s596, 16
      %s601 = sadd.s32 %s599, %s600
      %s602 = smul.addr %s601, 4
      %s603 = scalar_lea.vmem %s2, %s602
      %p604 = pneg %p86
      %p605 = pneg %p83
      %s606 = sadd.s32 %s28, 1
      %p607 = scmp.lt.s32.totalorder %s606, 0
      %s608 = ssub.s32 0, %s606
      %s609 = scalar_select %p607, %s608, %s606
      %s610 = sand.u32 %s609, 1
      %s611 = ssub.s32 0, %s610
      %s612 = scalar_select %p607, %s611, %s610
      %p613 = scmp.ne.s32.totalorder %s612, 0
      %p614 = scmp.lt.s32.totalorder %s612, 0
      %p615 = pnand %p614, %p613
      %p616 = pneg %p615
      %s617 = sadd.s32 %s612, 2
      %s618 = scalar_select %p616, %s617, %s612
      %p619 = scmp.lt.s32.totalorder %s27, 3
      %s620 = scalar_select %p619, %s27, 3
      %p621 = scmp.lt.s32.totalorder %s618, 1
      %s622 = scalar_select %p621, %s618, 1
      %s623 = smul.addr %s622, 8
      %s624 = smul.addr %s620, 16
      %s625 = sadd.s32 %s623, %s624
      %s626 = smul.addr %s625, 4
      %s627 = scalar_lea.vmem %s3, %s626
      %p628 = pneg %p140
      %p629 = pneg %p137
      %p630 = scmp.lt.s32.totalorder %s27, 3
      %s631 = scalar_select %p630, %s27, 3
      %p632 = scmp.lt.s32.totalorder %s28, 1
      %s633 = scalar_select %p632, %s28, 1
      %s634 = smul.addr %s633, 8
      %s635 = smul.addr %s631, 16
      %s636 = sadd.s32 %s634, %s635
      %s637 = smul.addr %s636, 4
      %s638 = scalar_lea.vmem %s4, %s637
      %p639 = pneg %p168
      %p640 = pneg %p165
      %s641 = sadd.s32 %s28, 1
      %p642 = scmp.lt.s32.totalorder %s641, 0
      %s643 = ssub.s32 0, %s641
      %s644 = scalar_select %p642, %s643, %s641
      %s645 = sand.u32 %s644, 1
      %s646 = ssub.s32 0, %s645
      %s647 = scalar_select %p642, %s646, %s645
      %p648 = scmp.ne.s32.totalorder %s647, 0
      %p649 = scmp.lt.s32.totalorder %s647, 0
      %p650 = pnand %p649, %p648
      %p651 = pneg %p650
      %s652 = sadd.s32 %s647, 2
      %s653 = scalar_select %p651, %s652, %s647
      %p654 = scmp.lt.s32.totalorder %s27, 3
      %s655 = scalar_select %p654, %s27, 3
      %p656 = scmp.lt.s32.totalorder %s653, 1
      %s657 = scalar_select %p656, %s653, 1
      %s658 = smul.addr %s657, 8
      %s659 = smul.addr %s655, 16
      %s660 = sadd.s32 %s658, %s659
      %s661 = smul.addr %s660, 4
      %s662 = scalar_lea.vmem %s5, %s661
      %p663 = pneg %p222
      %p664 = pneg %p219
      %p665 = scmp.lt.s32.totalorder %s27, 3
      %s666 = scalar_select %p665, %s27, 3
      %p667 = scmp.lt.s32.totalorder %s28, 1
      %s668 = scalar_select %p667, %s28, 1
      %s669 = smul.addr %s668, 8
      %s670 = smul.addr %s666, 16
      %s671 = sadd.s32 %s669, %s670
      %s672 = smul.addr %s671, 8
      %s673 = scalar_lea.vmem %s6, %s672
      %p674 = pneg %p250
      %p675 = pneg %p247
      %p676 = scmp.lt.s32.totalorder %s27, 3
      %s677 = scalar_select %p676, %s27, 3
      %p678 = scmp.lt.s32.totalorder %s28, 1
      %s679 = scalar_select %p678, %s28, 1
      %s680 = smul.addr %s677, 2
      %s681 = sadd.s32 %s679, %s680
      %s682 = scalar_lea.vmem %s7, %s681
      %p683 = pneg %p278
      %p684 = pneg %p275
      %s685 = sadd.s32 %s28, 1
      %p686 = scmp.lt.s32.totalorder %s685, 0
      %s687 = ssub.s32 0, %s685
      %s688 = scalar_select %p686, %s687, %s685
      %s689 = sand.u32 %s688, 1
      %s690 = ssub.s32 0, %s689
      %s691 = scalar_select %p686, %s690, %s689
      %p692 = scmp.ne.s32.totalorder %s691, 0
      %p693 = scmp.lt.s32.totalorder %s691, 0
      %p694 = pnand %p693, %p692
      %p695 = pneg %p694
      %s696 = sadd.s32 %s691, 2
      %s697 = scalar_select %p695, %s696, %s691
      %p698 = scmp.lt.s32.totalorder %s27, 3
      %s699 = scalar_select %p698, %s27, 3
      %p700 = scmp.lt.s32.totalorder %s697, 1
      %s701 = scalar_select %p700, %s697, 1
      %s702 = smul.addr %s699, 2
      %s703 = sadd.s32 %s701, %s702
      %s704 = scalar_lea.vmem %s8, %s703
      %p705 = pneg %p332
      %p706 = pneg %p329
      %p707 = pneg %p360
      %p708 = pneg %p357
      %p709 = scmp.lt.s32.totalorder %s27, 3
      %s710 = scalar_select %p709, %s27, 3
      %p711 = scmp.lt.s32.totalorder %s28, 1
      %s712 = scalar_select %p711, %s28, 1
      %s713 = smul.addr %s712, 8
      %s714 = smul.addr %s710, 16
      %s715 = sadd.s32 %s713, %s714
      %s716 = smul.addr %s715, 4
      %s717 = scalar_lea.vmem %s9, %s716
      %p718 = pneg %p388
      %p719 = pneg %p385
      %p720 = scmp.lt.s32.totalorder %s27, 3
      %s721 = scalar_select %p720, %s27, 3
      %p722 = scmp.lt.s32.totalorder %s28, 1
      %s723 = scalar_select %p722, %s28, 1
      %s724 = smul.addr %s723, 8
      %s725 = smul.addr %s721, 16
      %s726 = sadd.s32 %s724, %s725
      %s727 = smul.addr %s726, 8
      %s728 = scalar_lea.vmem %s10, %s727
      %p729 = scmp.lt.s32.totalorder %s27, 3
      %s730 = scalar_select %p729, %s27, 3
      %p731 = scmp.lt.s32.totalorder %s28, 1
      %s732 = scalar_select %p731, %s28, 1
      %s733 = smul.addr %s732, 8
      %s734 = smul.addr %s730, 16
      %s735 = sadd.s32 %s733, %s734
      %s736 = smul.addr %s735, 4
      %s737 = scalar_lea.vmem %s1, %s736
      %p738 = scmp.lt.s32.totalorder %s27, 3
      %s739 = scalar_select %p738, %s27, 3
      %p740 = scmp.lt.s32.totalorder %s28, 1
      %s741 = scalar_select %p740, %s28, 1
      %s742 = smul.addr %s741, 8
      %s743 = smul.addr %s739, 16
      %s744 = sadd.s32 %s742, %s743
      %s745 = smul.addr %s744, 4
      %s746 = scalar_lea.vmem %s2, %s745
      %s747 = sadd.s32 %s28, 1
      %p748 = scmp.lt.s32.totalorder %s747, 0
      %s749 = ssub.s32 0, %s747
      %s750 = scalar_select %p748, %s749, %s747
      %s751 = sand.u32 %s750, 1
      %s752 = ssub.s32 0, %s751
      %s753 = scalar_select %p748, %s752, %s751
      %p754 = scmp.ne.s32.totalorder %s753, 0
      %p755 = scmp.lt.s32.totalorder %s753, 0
      %p756 = pnand %p755, %p754
      %p757 = pneg %p756
      %s758 = sadd.s32 %s753, 2
      %s759 = scalar_select %p757, %s758, %s753
      %p760 = scmp.lt.s32.totalorder %s27, 3
      %s761 = scalar_select %p760, %s27, 3
      %p762 = scmp.lt.s32.totalorder %s759, 1
      %s763 = scalar_select %p762, %s759, 1
      %s764 = smul.addr %s763, 8
      %s765 = smul.addr %s761, 16
      %s766 = sadd.s32 %s764, %s765
      %s767 = smul.addr %s766, 4
      %s768 = scalar_lea.vmem %s3, %s767
      %s769 = sadd.s32 %s28, 1
      %p770 = scmp.lt.s32.totalorder %s769, 0
      %s771 = ssub.s32 0, %s769
      %s772 = scalar_select %p770, %s771, %s769
      %s773 = sand.u32 %s772, 1
      %s774 = ssub.s32 0, %s773
      %s775 = scalar_select %p770, %s774, %s773
      %p776 = scmp.ne.s32.totalorder %s775, 0
      %p777 = scmp.lt.s32.totalorder %s775, 0
      %p778 = pnand %p777, %p776
      %p779 = pneg %p778
      %s780 = sadd.s32 %s775, 2
      %s781 = scalar_select %p779, %s780, %s775
      %p782 = scmp.lt.s32.totalorder %s27, 3
      %s783 = scalar_select %p782, %s27, 3
      %p784 = scmp.lt.s32.totalorder %s28, 1
      %s785 = scalar_select %p784, %s28, 1
      %s786 = smul.addr %s785, 8
      %s787 = smul.addr %s783, 16
      %s788 = sadd.s32 %s786, %s787
      %s789 = smul.addr %s788, 4
      %s790 = scalar_lea.vmem %s4, %s789
      %s791 = sadd.s32 %s28, 1
      %p792 = scmp.lt.s32.totalorder %s791, 0
      %s793 = ssub.s32 0, %s791
      %s794 = scalar_select %p792, %s793, %s791
      %s795 = sand.u32 %s794, 1
      %s796 = ssub.s32 0, %s795
      %s797 = scalar_select %p792, %s796, %s795
      %p798 = scmp.ne.s32.totalorder %s797, 0
      %p799 = scmp.lt.s32.totalorder %s797, 0
      %p800 = pnand %p799, %p798
      %p801 = pneg %p800
      %s802 = sadd.s32 %s797, 2
      %s803 = scalar_select %p801, %s802, %s797
      %p804 = scmp.lt.s32.totalorder %s27, 3
      %s805 = scalar_select %p804, %s27, 3
      %p806 = scmp.lt.s32.totalorder %s803, 1
      %s807 = scalar_select %p806, %s803, 1
      %s808 = smul.addr %s807, 8
      %s809 = smul.addr %s805, 16
      %s810 = sadd.s32 %s808, %s809
      %s811 = smul.addr %s810, 4
      %s812 = scalar_lea.vmem %s5, %s811
      %s813 = sadd.s32 %s28, 1
      %p814 = scmp.lt.s32.totalorder %s813, 0
      %s815 = ssub.s32 0, %s813
      %s816 = scalar_select %p814, %s815, %s813
      %s817 = sand.u32 %s816, 1
      %s818 = ssub.s32 0, %s817
      %s819 = scalar_select %p814, %s818, %s817
      %p820 = scmp.ne.s32.totalorder %s819, 0
      %p821 = scmp.lt.s32.totalorder %s819, 0
      %p822 = pnand %p821, %p820
      %p823 = pneg %p822
      %s824 = sadd.s32 %s819, 2
      %s825 = scalar_select %p823, %s824, %s819
      %p826 = scmp.lt.s32.totalorder %s27, 3
      %s827 = scalar_select %p826, %s27, 3
      %p828 = scmp.lt.s32.totalorder %s28, 1
      %s829 = scalar_select %p828, %s28, 1
      %s830 = smul.addr %s829, 8
      %s831 = smul.addr %s827, 16
      %s832 = sadd.s32 %s830, %s831
      %s833 = smul.addr %s832, 8
      %s834 = scalar_lea.vmem %s6, %s833
      %p835 = scmp.lt.s32.totalorder %s27, 3
      %s836 = scalar_select %p835, %s27, 3
      %p837 = scmp.lt.s32.totalorder %s28, 1
      %s838 = scalar_select %p837, %s28, 1
      %s839 = smul.addr %s836, 2
      %s840 = sadd.s32 %s838, %s839
      %s841 = scalar_lea.vmem %s7, %s840
      %s842 = sadd.s32 %s28, 1
      %p843 = scmp.lt.s32.totalorder %s842, 0
      %s844 = ssub.s32 0, %s842
      %s845 = scalar_select %p843, %s844, %s842
      %s846 = sand.u32 %s845, 1
      %s847 = ssub.s32 0, %s846
      %s848 = scalar_select %p843, %s847, %s846
      %p849 = scmp.ne.s32.totalorder %s848, 0
      %p850 = scmp.lt.s32.totalorder %s848, 0
      %p851 = pnand %p850, %p849
      %p852 = pneg %p851
      %s853 = sadd.s32 %s848, 2
      %s854 = scalar_select %p852, %s853, %s848
      %p855 = scmp.lt.s32.totalorder %s27, 3
      %s856 = scalar_select %p855, %s27, 3
      %p857 = scmp.lt.s32.totalorder %s854, 1
      %s858 = scalar_select %p857, %s854, 1
      %s859 = smul.addr %s856, 2
      %s860 = sadd.s32 %s858, %s859
      %s861 = scalar_lea.vmem %s8, %s860
      %s862 = sadd.s32 %s28, 1
      %p863 = scmp.lt.s32.totalorder %s862, 0
      %s864 = ssub.s32 0, %s862
      %s865 = scalar_select %p863, %s864, %s862
      %s866 = sand.u32 %s865, 1
      %s867 = ssub.s32 0, %s866
      %s868 = scalar_select %p863, %s867, %s866
      %p869 = scmp.ne.s32.totalorder %s868, 0
      %p870 = scmp.lt.s32.totalorder %s868, 0
      %p871 = pnand %p870, %p869
      %p872 = pneg %p871
      %s873 = sadd.s32 %s868, 2
      %s874 = scalar_select %p872, %s873, %s868
      %p875 = scmp.lt.s32.totalorder %s27, 3
      %s876 = scalar_select %p875, %s27, 3
      %p877 = scmp.lt.s32.totalorder %s28, 1
      %s878 = scalar_select %p877, %s28, 1
      %s879 = smul.addr %s878, 8
      %s880 = smul.addr %s876, 16
      %s881 = sadd.s32 %s879, %s880
      %s882 = smul.addr %s881, 4
      %s883 = scalar_lea.vmem %s9, %s882
      %p884 = scmp.lt.s32.totalorder %s27, 3
      %s885 = scalar_select %p884, %s27, 3
      %p886 = scmp.lt.s32.totalorder %s28, 1
      %s887 = scalar_select %p886, %s28, 1
      %s888 = smul.addr %s887, 8
      %s889 = smul.addr %s885, 16
      %s890 = sadd.s32 %s888, %s889
      %s891 = smul.addr %s890, 8
      %s892 = scalar_lea.vmem %s10, %s891
      %s894 = sld [smem:[#allocation3]]
      %v895 = vld [vmem:[%s737] sm:$0xf]
      %v896 = vld [vmem:[%s737 + $0x4] sm:$0xf]
      %v897 = vld [vmem:[%s737 + $0x8] sm:$0xf]
      %v898 = vld [vmem:[%s737 + $0xc] sm:$0xf]
      %v899 = vld [vmem:[%s737 + $0x10] sm:$0xf]
      %v900 = vld [vmem:[%s737 + $0x14] sm:$0xf]
      %v901 = vld [vmem:[%s737 + $0x18] sm:$0xf]
      %v902 = vld [vmem:[%s737 + $0x1c] sm:$0xf]
      %v903 = vld [vmem:[%s746] sm:$0xf]
      %v904 = vld [vmem:[%s746 + $0x4] sm:$0xf]
      %v905 = vld [vmem:[%s746 + $0x8] sm:$0xf]
      %v906 = vld [vmem:[%s746 + $0xc] sm:$0xf]
      %v907 = vld [vmem:[%s746 + $0x10] sm:$0xf]
      %v908 = vld [vmem:[%s746 + $0x14] sm:$0xf]
      %v909 = vld [vmem:[%s746 + $0x18] sm:$0xf]
      %v910 = vld [vmem:[%s746 + $0x1c] sm:$0xf]
      %v911 = vld [vmem:[%s790] sm:$0xf]
      %v912 = vld [vmem:[%s790 + $0x4] sm:$0xf]
      %v913 = vld [vmem:[%s790 + $0x8] sm:$0xf]
      %v914 = vld [vmem:[%s790 + $0xc] sm:$0xf]
      %v915 = vld [vmem:[%s790 + $0x10] sm:$0xf]
      %v916 = vld [vmem:[%s790 + $0x14] sm:$0xf]
      %v917 = vld [vmem:[%s790 + $0x18] sm:$0xf]
      %v918 = vld [vmem:[%s790 + $0x1c] sm:$0xf]
      %v919 = vld [vmem:[%s834] sm:$0xff]
      %v920 = vld [vmem:[%s834 + $0x8] sm:$0xff]
      %v921 = vld [vmem:[%s834 + $0x10] sm:$0xff]
      %v922 = vld [vmem:[%s834 + $0x18] sm:$0xff]
      %v923 = vld [vmem:[%s834 + $0x20] sm:$0xff]
      %v924 = vld [vmem:[%s834 + $0x28] sm:$0xff]
      %v925 = vld [vmem:[%s834 + $0x30] sm:$0xff]
      %v926 = vld [vmem:[%s834 + $0x38] sm:$0xff]
      %v927 = vld [vmem:[%s841] sm:$0x1]
      %v928 = vld [vmem:[%s768] sm:$0xf]
      %v929 = vld [vmem:[%s768 + $0x4] sm:$0xf]
      %v930 = vld [vmem:[%s768 + $0x8] sm:$0xf]
      %v931 = vld [vmem:[%s768 + $0xc] sm:$0xf]
      %v932 = vld [vmem:[%s768 + $0x10] sm:$0xf]
      %v933 = vld [vmem:[%s768 + $0x14] sm:$0xf]
      %v934 = vld [vmem:[%s768 + $0x18] sm:$0xf]
      %v935 = vld [vmem:[%s768 + $0x1c] sm:$0xf]
      %v936 = vld [vmem:[%s812] sm:$0xf]
      %v937 = vld [vmem:[%s812 + $0x4] sm:$0xf]
      %v938 = vld [vmem:[%s812 + $0x8] sm:$0xf]
      %v939 = vld [vmem:[%s812 + $0xc] sm:$0xf]
      %v940 = vld [vmem:[%s812 + $0x10] sm:$0xf]
      %v941 = vld [vmem:[%s812 + $0x14] sm:$0xf]
      %v942 = vld [vmem:[%s812 + $0x18] sm:$0xf]
      %v943 = vld [vmem:[%s812 + $0x1c] sm:$0xf]
      %v944 = vld [vmem:[%s861] sm:$0x1]
      %v953 = vunpack.c.l.b16 %v895
      %v954 = vunpack.c.l.b16 %v896
      %v955 = vunpack.c.l.b16 %v897
      %v956 = vunpack.c.l.b16 %v898
      %v957 = vunpack.c.l.b16 %v899
      %v958 = vunpack.c.l.b16 %v900
      %v959 = vunpack.c.l.b16 %v901
      %v960 = vunpack.c.l.b16 %v902
      %v961 = vpack.c.b16 %v954, %v953
      %v962 = vpack.c.b16 %v956, %v955
      %v963 = vpack.c.b16 %v958, %v957
      %v964 = vpack.c.b16 %v960, %v959
      %v973 = vunpack.c.l.b16 %v903
      %v974 = vunpack.c.l.b16 %v904
      %v975 = vunpack.c.l.b16 %v905
      %v976 = vunpack.c.l.b16 %v906
      %v977 = vunpack.c.l.b16 %v907
      %v978 = vunpack.c.l.b16 %v908
      %v979 = vunpack.c.l.b16 %v909
      %v980 = vunpack.c.l.b16 %v910
      %v981 = vpack.c.b16 %v974, %v973
      %v982 = vpack.c.b16 %v976, %v975
      %v983 = vpack.c.b16 %v978, %v977
      %v984 = vpack.c.b16 %v980, %v979
      %vm985 = vcmask 130048
      %v987 = vsel %vm985, %v961, 0
      %v990 = vsel %vm985, %v962, 0
      %v993 = vsel %vm985, %v963, 0
      %v996 = vsel %vm985, %v964, 0
      %v999 = vsel %vm985, %v981, 0
      %v1002 = vsel %vm985, %v982, 0
      %v1005 = vsel %vm985, %v983, 0
      %v1008 = vsel %vm985, %v984, 0
      %1010 = vmatprep.subr.bf16.mxu0 0
      %1011 = vmatpush1.bf16.xpose.msra.mxu0 %v999
      %1012 = vmatprep.subr.bf16.mxu0 0
      %1013 = vmatpush1.bf16.xpose.msra.mxu0 %v1002
      %1014 = vmatprep.subr.bf16.mxu0 0
      %1015 = vmatpush1.bf16.xpose.msra.mxu0 %v1005
      %1016 = vmatprep.subr.bf16.mxu0 0
      %1017 = vmatpush1.bf16.xpose.msra.mxu0 %v1008
      %1018 = vmatprep.subr.bf16.mxu0 0
      %1019 = vmatpush1.bf16.xpose.msra.mxu0 0
      %1020 = vmatprep.subr.bf16.mxu0 0
      %1021 = vmatpush1.bf16.xpose.msra.mxu0 0
      %1022 = vmatprep.subr.bf16.mxu0 0
      %1023 = vmatpush1.bf16.xpose.msra.mxu0 0
      %1024 = vmatprep.subr.bf16.mxu0 0
      %1025 = vmatpush1.bf16.xpose.msra.mxu0 0
      %1026 = vmatprep.subr.bf16.mxu0 0
      %1027 = vmatpush1.bf16.xpose.msra.mxu0 0
      %1028 = vmatprep.subr.bf16.mxu0 0
      %1029 = vmatpush1.bf16.xpose.msra.mxu0 0
      %1030 = vmatprep.subr.bf16.mxu0 0
      %1031 = vmatpush1.bf16.xpose.msra.mxu0 0
      %1032 = vmatprep.subr.bf16.mxu0 0
      %1033 = vmatpush1.bf16.xpose.msra.mxu0 0
      %1034 = vmatprep.subr.bf16.mxu0 0
      %1035 = vmatpush1.bf16.xpose.msra.mxu0 0
      %1036 = vmatprep.subr.bf16.mxu0 0
      %1037 = vmatpush1.bf16.xpose.msra.mxu0 0
      %1038 = vmatprep.subr.bf16.mxu0 0
      %1039 = vmatpush1.bf16.xpose.msra.mxu0 0
      %1040 = vmatprep.subr.bf16.mxu0 0
      %1041 = vmatpush1.bf16.xpose.msra.mxu0 0
      %1042 = vmatprep.mubr.bf16.mxu0 0
      %1043 = vmatmul.mubr.bf16.gmra.mrb[0].mxu0 %v987
      %v1044 = vpop.f32.mrb[0].mxu0
      %v1045 = vadd.f32 0.0, %v1044
      %v1046 = vpop.f32.mrb[0].mxu0
      %v1047 = vpop.f32.mrb[0].mxu0
      %v1048 = vadd.f32 0.0, %v1047
      %v1049 = vpop.f32.mrb[0].mxu0
      %1050 = vmatprep.mubr.bf16.mxu0 0
      %1051 = vmatmul.mubr.bf16.gmra.mrb[0].mxu0 %v990
      %v1052 = vpop.f32.mrb[0].mxu0
      %v1053 = vadd.f32 0.0, %v1052
      %v1054 = vpop.f32.mrb[0].mxu0
      %v1055 = vpop.f32.mrb[0].mxu0
      %v1056 = vadd.f32 0.0, %v1055
      %v1057 = vpop.f32.mrb[0].mxu0
      %1058 = vmatprep.mubr.bf16.mxu0 0
      %1059 = vmatmul.mubr.bf16.gmra.mrb[0].mxu0 %v993
      %v1060 = vpop.f32.mrb[0].mxu0
      %v1061 = vadd.f32 0.0, %v1060
      %v1062 = vpop.f32.mrb[0].mxu0
      %v1063 = vpop.f32.mrb[0].mxu0
      %v1064 = vadd.f32 0.0, %v1063
      %v1065 = vpop.f32.mrb[0].mxu0
      %1066 = vmatprep.mubr.bf16.mxu0 0
      %1067 = vmatmul.mubr.bf16.gmra.mrb[0].mxu0 %v996
      %v1068 = vpop.f32.mrb[0].mxu0
      %v1069 = vadd.f32 0.0, %v1068
      %v1070 = vpop.f32.mrb[0].mxu0
      %v1071 = vpop.f32.mrb[0].mxu0
      %v1072 = vadd.f32 0.0, %v1071
      %v1073 = vpop.f32.mrb[0].mxu0
      %1074 = vdwg.mxu0
      %v1075 = vmul.f32 %v1045, 0.25
      %v1076 = vmul.f32 %v1048, 0.25
      %v1077 = vmul.f32 %v1053, 0.25
      %v1078 = vmul.f32 %v1056, 0.25
      %v1079 = vmul.f32 %v1061, 0.25
      %v1080 = vmul.f32 %v1064, 0.25
      %v1081 = vmul.f32 %v1069, 0.25
      %v1082 = vmul.f32 %v1072, 0.25
      %v1083 = vstv %s894
      %vm1084 = vcmp.ge.s32.totalorder %v927, %v1083
      %v1085 = vsel %vm1084, 1, 0
      %v1086 = vlaneseq
      %v1087 = vshrl.u32 %v1086, 7
      %v1088 = vsub.s32 0, %v1087
      %v1089 = vrot.slane %v1085, %v1088
      %vm1090 = vcmp.eq.s32.totalorder %v1089, 1
      %v1091 = vsel %vm1090, -3.4028235e+38, %v1075
      %v1092 = vsel %vm1090, -3.4028235e+38, %v1076
      %v1093 = vsel %vm1090, -3.4028235e+38, %v1077
      %v1094 = vsel %vm1090, -3.4028235e+38, %v1078
      %v1095 = vsel %vm1090, -3.4028235e+38, %v1079
      %v1096 = vsel %vm1090, -3.4028235e+38, %v1080
      %v1097 = vsel %vm1090, -3.4028235e+38, %v1081
      %v1098 = vsel %vm1090, -3.4028235e+38, %v1082
      %1099 = vset.pattern.permute.xlu0 0
      %1100 = vperm.xlu0 %1099, %v919
      %v1101 = vpop.permute.xlu0 %1100
      %1102 = vset.pattern.permute.xlu0 0
      %1103 = vperm.xlu0 %1102, %v920
      %v1104 = vpop.permute.xlu0 %1103
      %1105 = vset.pattern.permute.xlu0 0
      %1106 = vperm.xlu0 %1105, %v921
      %v1107 = vpop.permute.xlu0 %1106
      %1108 = vset.pattern.permute.xlu0 0
      %1109 = vperm.xlu0 %1108, %v922
      %v1110 = vpop.permute.xlu0 %1109
      %1111 = vset.pattern.permute.xlu0 0
      %1112 = vperm.xlu0 %1111, %v923
      %v1113 = vpop.permute.xlu0 %1112
      %1114 = vset.pattern.permute.xlu0 0
      %1115 = vperm.xlu0 %1114, %v924
      %v1116 = vpop.permute.xlu0 %1115
      %1117 = vset.pattern.permute.xlu0 0
      %1118 = vperm.xlu0 %1117, %v925
      %v1119 = vpop.permute.xlu0 %1118
      %1120 = vset.pattern.permute.xlu0 0
      %1121 = vperm.xlu0 %1120, %v926
      %v1122 = vpop.permute.xlu0 %1121
      %v1123 = vlaneseq
      %v1124 = vshrl.u32 %v1123, 7
      %v1125 = vsub.s32 0, %v1124
      %v1126 = vrot.slane %v927, %v1125
      %vm1127 = vcmp.eq.s32.totalorder %v1101, %v1126
      %vm1128 = vcmp.eq.s32.totalorder %v1104, %v1126
      %vm1129 = vcmp.eq.s32.totalorder %v1107, %v1126
      %vm1130 = vcmp.eq.s32.totalorder %v1110, %v1126
      %vm1131 = vcmp.eq.s32.totalorder %v1113, %v1126
      %vm1132 = vcmp.eq.s32.totalorder %v1116, %v1126
      %vm1133 = vcmp.eq.s32.totalorder %v1119, %v1126
      %vm1134 = vcmp.eq.s32.totalorder %v1122, %v1126
      %v1135 = vsel %vm1127, -50000.0, %v1091
      %v1136 = vsel %vm1128, -50000.0, %v1092
      %v1137 = vsel %vm1129, -50000.0, %v1093
      %v1138 = vsel %vm1130, -50000.0, %v1094
      %v1139 = vsel %vm1131, -50000.0, %v1095
      %v1140 = vsel %vm1132, -50000.0, %v1096
      %v1141 = vsel %vm1133, -50000.0, %v1097
      %v1142 = vsel %vm1134, -50000.0, %v1098
      %v1151 = vunpack.c.l.b16 %v928
      %v1152 = vunpack.c.l.b16 %v929
      %v1153 = vunpack.c.l.b16 %v930
      %v1154 = vunpack.c.l.b16 %v931
      %v1155 = vunpack.c.l.b16 %v932
      %v1156 = vunpack.c.l.b16 %v933
      %v1157 = vunpack.c.l.b16 %v934
      %v1158 = vunpack.c.l.b16 %v935
      %v1159 = vpack.c.b16 %v1152, %v1151
      %v1160 = vpack.c.b16 %v1154, %v1153
      %v1161 = vpack.c.b16 %v1156, %v1155
      %v1162 = vpack.c.b16 %v1158, %v1157
      %v1164 = vsel %vm985, %v1159, 0
      %v1167 = vsel %vm985, %v1160, 0
      %v1170 = vsel %vm985, %v1161, 0
      %v1173 = vsel %vm985, %v1162, 0
      %1175 = vmatprep.subr.bf16.mxu0 0
      %1176 = vmatpush1.bf16.xpose.msra.mxu0 %v1164
      %1177 = vmatprep.subr.bf16.mxu0 0
      %1178 = vmatpush1.bf16.xpose.msra.mxu0 %v1167
      %1179 = vmatprep.subr.bf16.mxu0 0
      %1180 = vmatpush1.bf16.xpose.msra.mxu0 %v1170
      %1181 = vmatprep.subr.bf16.mxu0 0
      %1182 = vmatpush1.bf16.xpose.msra.mxu0 %v1173
      %1183 = vmatprep.subr.bf16.mxu0 0
      %1184 = vmatpush1.bf16.xpose.msra.mxu0 0
      %1185 = vmatprep.subr.bf16.mxu0 0
      %1186 = vmatpush1.bf16.xpose.msra.mxu0 0
      %1187 = vmatprep.subr.bf16.mxu0 0
      %1188 = vmatpush1.bf16.xpose.msra.mxu0 0
      %1189 = vmatprep.subr.bf16.mxu0 0
      %1190 = vmatpush1.bf16.xpose.msra.mxu0 0
      %1191 = vmatprep.subr.bf16.mxu0 0
      %1192 = vmatpush1.bf16.xpose.msra.mxu0 0
      %1193 = vmatprep.subr.bf16.mxu0 0
      %1194 = vmatpush1.bf16.xpose.msra.mxu0 0
      %1195 = vmatprep.subr.bf16.mxu0 0
      %1196 = vmatpush1.bf16.xpose.msra.mxu0 0
      %1197 = vmatprep.subr.bf16.mxu0 0
      %1198 = vmatpush1.bf16.xpose.msra.mxu0 0
      %1199 = vmatprep.subr.bf16.mxu0 0
      %1200 = vmatpush1.bf16.xpose.msra.mxu0 0
      %1201 = vmatprep.subr.bf16.mxu0 0
      %1202 = vmatpush1.bf16.xpose.msra.mxu0 0
      %1203 = vmatprep.subr.bf16.mxu0 0
      %1204 = vmatpush1.bf16.xpose.msra.mxu0 0
      %1205 = vmatprep.subr.bf16.mxu0 0
      %1206 = vmatpush1.bf16.xpose.msra.mxu0 0
      %1207 = vmatprep.mubr.bf16.mxu0 0
      %1208 = vmatmul.mubr.bf16.gmra.mrb[0].mxu0 %v987
      %v1209 = vpop.f32.mrb[0].mxu0
      %v1210 = vadd.f32 0.0, %v1209
      %v1211 = vpop.f32.mrb[0].mxu0
      %v1212 = vpop.f32.mrb[0].mxu0
      %v1213 = vadd.f32 0.0, %v1212
      %v1214 = vpop.f32.mrb[0].mxu0
      %1215 = vmatprep.mubr.bf16.mxu0 0
      %1216 = vmatmul.mubr.bf16.gmra.mrb[0].mxu0 %v990
      %v1217 = vpop.f32.mrb[0].mxu0
      %v1218 = vadd.f32 0.0, %v1217
      %v1219 = vpop.f32.mrb[0].mxu0
      %v1220 = vpop.f32.mrb[0].mxu0
      %v1221 = vadd.f32 0.0, %v1220
      %v1222 = vpop.f32.mrb[0].mxu0
      %1223 = vmatprep.mubr.bf16.mxu0 0
      %1224 = vmatmul.mubr.bf16.gmra.mrb[0].mxu0 %v993
      %v1225 = vpop.f32.mrb[0].mxu0
      %v1226 = vadd.f32 0.0, %v1225
      %v1227 = vpop.f32.mrb[0].mxu0
      %v1228 = vpop.f32.mrb[0].mxu0
      %v1229 = vadd.f32 0.0, %v1228
      %v1230 = vpop.f32.mrb[0].mxu0
      %1231 = vmatprep.mubr.bf16.mxu0 0
      %1232 = vmatmul.mubr.bf16.gmra.mrb[0].mxu0 %v996
      %v1233 = vpop.f32.mrb[0].mxu0
      %v1234 = vadd.f32 0.0, %v1233
      %v1235 = vpop.f32.mrb[0].mxu0
      %v1236 = vpop.f32.mrb[0].mxu0
      %v1237 = vadd.f32 0.0, %v1236
      %v1238 = vpop.f32.mrb[0].mxu0
      %1239 = vdwg.mxu0
      %v1240 = vmul.f32 %v1210, 0.25
      %v1241 = vmul.f32 %v1213, 0.25
      %v1242 = vmul.f32 %v1218, 0.25
      %v1243 = vmul.f32 %v1221, 0.25
      %v1244 = vmul.f32 %v1226, 0.25
      %v1245 = vmul.f32 %v1229, 0.25
      %v1246 = vmul.f32 %v1234, 0.25
      %v1247 = vmul.f32 %v1237, 0.25
      %vm1248 = vcmp.ge.s32.totalorder %v944, %v1083
      %v1249 = vsel %vm1248, 1, 0
      %v1250 = vlaneseq
      %v1251 = vshrl.u32 %v1250, 7
      %v1252 = vsub.s32 0, %v1251
      %v1253 = vrot.slane %v1249, %v1252
      %vm1254 = vcmp.eq.s32.totalorder %v1253, 1
      %v1255 = vsel %vm1254, -3.4028235e+38, %v1240
      %v1256 = vsel %vm1254, -3.4028235e+38, %v1241
      %v1257 = vsel %vm1254, -3.4028235e+38, %v1242
      %v1258 = vsel %vm1254, -3.4028235e+38, %v1243
      %v1259 = vsel %vm1254, -3.4028235e+38, %v1244
      %v1260 = vsel %vm1254, -3.4028235e+38, %v1245
      %v1261 = vsel %vm1254, -3.4028235e+38, %v1246
      %v1262 = vsel %vm1254, -3.4028235e+38, %v1247
      %v1263 = vlaneseq
      %v1264 = vshrl.u32 %v1263, 7
      %v1265 = vsub.s32 0, %v1264
      %v1266 = vrot.slane %v944, %v1265
      %vm1267 = vcmp.eq.s32.totalorder %v1101, %v1266
      %vm1268 = vcmp.eq.s32.totalorder %v1104, %v1266
      %vm1269 = vcmp.eq.s32.totalorder %v1107, %v1266
      %vm1270 = vcmp.eq.s32.totalorder %v1110, %v1266
      %vm1271 = vcmp.eq.s32.totalorder %v1113, %v1266
      %vm1272 = vcmp.eq.s32.totalorder %v1116, %v1266
      %vm1273 = vcmp.eq.s32.totalorder %v1119, %v1266
      %vm1274 = vcmp.eq.s32.totalorder %v1122, %v1266
      %v1275 = vsel %vm1267, -50000.0, %v1255
      %v1276 = vsel %vm1268, -50000.0, %v1256
      %v1277 = vsel %vm1269, -50000.0, %v1257
      %v1278 = vsel %vm1270, -50000.0, %v1258
      %v1279 = vsel %vm1271, -50000.0, %v1259
      %v1280 = vsel %vm1272, -50000.0, %v1260
      %v1281 = vsel %vm1273, -50000.0, %v1261
      %v1282 = vsel %vm1274, -50000.0, %v1262
      %vm1283 = vcmask 523264
      %v1284 = vsel %vm1283, %v1135, -inf
      %1285 = vmax.xlane.f32.xlu0 %v1284
      %v1286 = vpop.xlane.xlu0 %1285
      %v1287 = vsel %vm1283, %v1136, -inf
      %1288 = vmax.xlane.f32.xlu0 %v1287
      %v1289 = vpop.xlane.xlu0 %1288
      %v1290 = vsel %vm1283, %v1137, -inf
      %1291 = vmax.xlane.f32.xlu0 %v1290
      %v1292 = vpop.xlane.xlu0 %1291
      %v1293 = vsel %vm1283, %v1138, -inf
      %1294 = vmax.xlane.f32.xlu0 %v1293
      %v1295 = vpop.xlane.xlu0 %1294
      %v1296 = vsel %vm1283, %v1139, -inf
      %1297 = vmax.xlane.f32.xlu0 %v1296
      %v1298 = vpop.xlane.xlu0 %1297
      %v1299 = vsel %vm1283, %v1140, -inf
      %1300 = vmax.xlane.f32.xlu0 %v1299
      %v1301 = vpop.xlane.xlu0 %1300
      %v1302 = vsel %vm1283, %v1141, -inf
      %1303 = vmax.xlane.f32.xlu0 %v1302
      %v1304 = vpop.xlane.xlu0 %1303
      %v1305 = vsel %vm1283, %v1142, -inf
      %1306 = vmax.xlane.f32.xlu0 %v1305
      %v1307 = vpop.xlane.xlu0 %1306
      %v1308 = vsel %vm1283, %v1275, -inf
      %1309 = vmax.xlane.f32.xlu0 %v1308
      %v1310 = vpop.xlane.xlu0 %1309
      %v1311 = vsel %vm1283, %v1276, -inf
      %1312 = vmax.xlane.f32.xlu0 %v1311
      %v1313 = vpop.xlane.xlu0 %1312
      %v1314 = vsel %vm1283, %v1277, -inf
      %1315 = vmax.xlane.f32.xlu0 %v1314
      %v1316 = vpop.xlane.xlu0 %1315
      %v1317 = vsel %vm1283, %v1278, -inf
      %1318 = vmax.xlane.f32.xlu0 %v1317
      %v1319 = vpop.xlane.xlu0 %1318
      %v1320 = vsel %vm1283, %v1279, -inf
      %1321 = vmax.xlane.f32.xlu0 %v1320
      %v1322 = vpop.xlane.xlu0 %1321
      %v1323 = vsel %vm1283, %v1280, -inf
      %1324 = vmax.xlane.f32.xlu0 %v1323
      %v1325 = vpop.xlane.xlu0 %1324
      %v1326 = vsel %vm1283, %v1281, -inf
      %1327 = vmax.xlane.f32.xlu0 %v1326
      %v1328 = vpop.xlane.xlu0 %1327
      %v1329 = vsel %vm1283, %v1282, -inf
      %1330 = vmax.xlane.f32.xlu0 %v1329
      %v1331 = vpop.xlane.xlu0 %1330
      %v1332 = vmax.f32 %v1286, %v1310
      %v1333 = vmax.f32 %v1289, %v1313
      %v1334 = vmax.f32 %v1292, %v1316
      %v1335 = vmax.f32 %v1295, %v1319
      %v1336 = vmax.f32 %v1298, %v1322
      %v1337 = vmax.f32 %v1301, %v1325
      %v1338 = vmax.f32 %v1304, %v1328
      %v1339 = vmax.f32 %v1307, %v1331
      %v1340 = vsub.f32 %v1135, %v1332
      %v1341 = vsub.f32 %v1136, %v1333
      %v1342 = vsub.f32 %v1137, %v1334
      %v1343 = vsub.f32 %v1138, %v1335
      %v1344 = vsub.f32 %v1139, %v1336
      %v1345 = vsub.f32 %v1140, %v1337
      %v1346 = vsub.f32 %v1141, %v1338
      %v1347 = vsub.f32 %v1142, %v1339
      %v1348 = vmul.f32 %v1340, 1.442695
      %v1349 = vpow.pop %v1348
      %v1350 = vmul.f32 %v1341, 1.442695
      %v1351 = vpow.pop %v1350
      %v1352 = vmul.f32 %v1342, 1.442695
      %v1353 = vpow.pop %v1352
      %v1354 = vmul.f32 %v1343, 1.442695
      %v1355 = vpow.pop %v1354
      %v1356 = vmul.f32 %v1344, 1.442695
      %v1357 = vpow.pop %v1356
      %v1358 = vmul.f32 %v1345, 1.442695
      %v1359 = vpow.pop %v1358
      %v1360 = vmul.f32 %v1346, 1.442695
      %v1361 = vpow.pop %v1360
      %v1362 = vmul.f32 %v1347, 1.442695
      %v1363 = vpow.pop %v1362
      %v1364 = vsub.f32 %v1275, %v1332
      %v1365 = vsub.f32 %v1276, %v1333
      %v1366 = vsub.f32 %v1277, %v1334
      %v1367 = vsub.f32 %v1278, %v1335
      %v1368 = vsub.f32 %v1279, %v1336
      %v1369 = vsub.f32 %v1280, %v1337
      %v1370 = vsub.f32 %v1281, %v1338
      %v1371 = vsub.f32 %v1282, %v1339
      %v1372 = vmul.f32 %v1364, 1.442695
      %v1373 = vpow.pop %v1372
      %v1374 = vmul.f32 %v1365, 1.442695
      %v1375 = vpow.pop %v1374
      %v1376 = vmul.f32 %v1366, 1.442695
      %v1377 = vpow.pop %v1376
      %v1378 = vmul.f32 %v1367, 1.442695
      %v1379 = vpow.pop %v1378
      %v1380 = vmul.f32 %v1368, 1.442695
      %v1381 = vpow.pop %v1380
      %v1382 = vmul.f32 %v1369, 1.442695
      %v1383 = vpow.pop %v1382
      %v1384 = vmul.f32 %v1370, 1.442695
      %v1385 = vpow.pop %v1384
      %v1386 = vmul.f32 %v1371, 1.442695
      %v1387 = vpow.pop %v1386
      %v1388 = vsel %vm1283, %v1349, 0.0
      %1389 = vadd.xlane.f32.xlu0 %v1388
      %v1390 = vpop.xlane.xlu0 %1389
      %v1391 = vsel %vm1283, %v1351, 0.0
      %1392 = vadd.xlane.f32.xlu0 %v1391
      %v1393 = vpop.xlane.xlu0 %1392
      %v1394 = vsel %vm1283, %v1353, 0.0
      %1395 = vadd.xlane.f32.xlu0 %v1394
      %v1396 = vpop.xlane.xlu0 %1395
      %v1397 = vsel %vm1283, %v1355, 0.0
      %1398 = vadd.xlane.f32.xlu0 %v1397
      %v1399 = vpop.xlane.xlu0 %1398
      %v1400 = vsel %vm1283, %v1357, 0.0
      %1401 = vadd.xlane.f32.xlu0 %v1400
      %v1402 = vpop.xlane.xlu0 %1401
      %v1403 = vsel %vm1283, %v1359, 0.0
      %1404 = vadd.xlane.f32.xlu0 %v1403
      %v1405 = vpop.xlane.xlu0 %1404
      %v1406 = vsel %vm1283, %v1361, 0.0
      %1407 = vadd.xlane.f32.xlu0 %v1406
      %v1408 = vpop.xlane.xlu0 %1407
      %v1409 = vsel %vm1283, %v1363, 0.0
      %1410 = vadd.xlane.f32.xlu0 %v1409
      %v1411 = vpop.xlane.xlu0 %1410
      %v1412 = vsel %vm1283, %v1373, 0.0
      %1413 = vadd.xlane.f32.xlu0 %v1412
      %v1414 = vpop.xlane.xlu0 %1413
      %v1415 = vsel %vm1283, %v1375, 0.0
      %1416 = vadd.xlane.f32.xlu0 %v1415
      %v1417 = vpop.xlane.xlu0 %1416
      %v1418 = vsel %vm1283, %v1377, 0.0
      %1419 = vadd.xlane.f32.xlu0 %v1418
      %v1420 = vpop.xlane.xlu0 %1419
      %v1421 = vsel %vm1283, %v1379, 0.0
      %1422 = vadd.xlane.f32.xlu0 %v1421
      %v1423 = vpop.xlane.xlu0 %1422
      %v1424 = vsel %vm1283, %v1381, 0.0
      %1425 = vadd.xlane.f32.xlu0 %v1424
      %v1426 = vpop.xlane.xlu0 %1425
      %v1427 = vsel %vm1283, %v1383, 0.0
      %1428 = vadd.xlane.f32.xlu0 %v1427
      %v1429 = vpop.xlane.xlu0 %1428
      %v1430 = vsel %vm1283, %v1385, 0.0
      %1431 = vadd.xlane.f32.xlu0 %v1430
      %v1432 = vpop.xlane.xlu0 %1431
      %v1433 = vsel %vm1283, %v1387, 0.0
      %1434 = vadd.xlane.f32.xlu0 %v1433
      %v1435 = vpop.xlane.xlu0 %1434
      %v1436 = vadd.f32 %v1390, %v1414
      %v1437 = vadd.f32 %v1393, %v1417
      %v1438 = vadd.f32 %v1396, %v1420
      %v1439 = vadd.f32 %v1399, %v1423
      %v1440 = vadd.f32 %v1402, %v1426
      %v1441 = vadd.f32 %v1405, %v1429
      %v1442 = vadd.f32 %v1408, %v1432
      %v1443 = vadd.f32 %v1411, %v1435
      %v1444 = vlog2.pop %v1436
      %v1445 = vmul.f32 %v1444, 0.6931472
      %v1446 = vlog2.pop %v1437
      %v1447 = vmul.f32 %v1446, 0.6931472
      %v1448 = vlog2.pop %v1438
      %v1449 = vmul.f32 %v1448, 0.6931472
      %v1450 = vlog2.pop %v1439
      %v1451 = vmul.f32 %v1450, 0.6931472
      %v1452 = vlog2.pop %v1440
      %v1453 = vmul.f32 %v1452, 0.6931472
      %v1454 = vlog2.pop %v1441
      %v1455 = vmul.f32 %v1454, 0.6931472
      %v1456 = vlog2.pop %v1442
      %v1457 = vmul.f32 %v1456, 0.6931472
      %v1458 = vlog2.pop %v1443
      %v1459 = vmul.f32 %v1458, 0.6931472
      %v1460 = vadd.f32 %v1332, %v1445
      %v1461 = vadd.f32 %v1333, %v1447
      %v1462 = vadd.f32 %v1334, %v1449
      %v1463 = vadd.f32 %v1335, %v1451
      %v1464 = vadd.f32 %v1336, %v1453
      %v1465 = vadd.f32 %v1337, %v1455
      %v1466 = vadd.f32 %v1338, %v1457
      %v1467 = vadd.f32 %v1339, %v1459
      %vm1468 = vcmask 7168
      %1469 = vst.msk [vmem:[%s892] sm:$0xff] %vm1468, %v1460
      %1470 = vst.msk [vmem:[%s892 + $0x8] sm:$0xff] %vm1468, %v1461
      %1471 = vst.msk [vmem:[%s892 + $0x10] sm:$0xff] %vm1468, %v1462
      %1472 = vst.msk [vmem:[%s892 + $0x18] sm:$0xff] %vm1468, %v1463
      %1473 = vst.msk [vmem:[%s892 + $0x20] sm:$0xff] %vm1468, %v1464
      %1474 = vst.msk [vmem:[%s892 + $0x28] sm:$0xff] %vm1468, %v1465
      %1475 = vst.msk [vmem:[%s892 + $0x30] sm:$0xff] %vm1468, %v1466
      %1476 = vst.msk [vmem:[%s892 + $0x38] sm:$0xff] %vm1468, %v1467
      %v1477 = vpack.c.bf16 %v1351, %v1349
      %v1478 = vpack.c.bf16 %v1355, %v1353
      %v1479 = vpack.c.bf16 %v1359, %v1357
      %v1480 = vpack.c.bf16 %v1363, %v1361
      %v1481 = vpack.c.bf16 %v1375, %v1373
      %v1482 = vpack.c.bf16 %v1379, %v1377
      %v1483 = vpack.c.bf16 %v1383, %v1381
      %v1484 = vpack.c.bf16 %v1387, %v1385
      %v1493 = vunpack.c.l.b16 %v936
      %v1494 = vunpack.c.l.b16 %v937
      %v1495 = vunpack.c.l.b16 %v938
      %v1496 = vunpack.c.l.b16 %v939
      %v1497 = vunpack.c.l.b16 %v940
      %v1498 = vunpack.c.l.b16 %v941
      %v1499 = vunpack.c.l.b16 %v942
      %v1500 = vunpack.c.l.b16 %v943
      %v1501 = vpack.c.b16 %v1494, %v1493
      %v1502 = vpack.c.b16 %v1496, %v1495
      %v1503 = vpack.c.b16 %v1498, %v1497
      %v1504 = vpack.c.b16 %v1500, %v1499
      %v1510 = vsel %vm1283, %v1481, 0
      %v1513 = vsel %vm1283, %v1482, 0
      %v1516 = vsel %vm1283, %v1483, 0
      %v1519 = vsel %vm1283, %v1484, 0
      %1521 = vmatprep.subr.bf16.mxu0 0
      %1522 = vmatpush1.bf16.msra.mxu0 %v1501
      %1523 = vmatprep.subr.bf16.mxu0 0
      %1524 = vmatpush1.bf16.msra.mxu0 %v1502
      %1525 = vmatprep.subr.bf16.mxu0 0
      %1526 = vmatpush1.bf16.msra.mxu0 %v1503
      %1527 = vmatprep.subr.bf16.mxu0 0
      %1528 = vmatpush1.bf16.msra.mxu0 %v1504
      %1529 = vmatprep.subr.bf16.mxu0 0
      %1530 = vmatpush1.bf16.msra.mxu0 0
      %1531 = vmatprep.subr.bf16.mxu0 0
      %1532 = vmatpush1.bf16.msra.mxu0 0
      %1533 = vmatprep.subr.bf16.mxu0 0
      %1534 = vmatpush1.bf16.msra.mxu0 0
      %1535 = vmatprep.subr.bf16.mxu0 0
      %1536 = vmatpush1.bf16.msra.mxu0 0
      %1537 = vmatprep.subr.bf16.mxu0 0
      %1538 = vmatpush1.bf16.msra.mxu0 0
      %1539 = vmatprep.subr.bf16.mxu0 0
      %1540 = vmatpush1.bf16.msra.mxu0 0
      %1541 = vmatprep.subr.bf16.mxu0 0
      %1542 = vmatpush1.bf16.msra.mxu0 0
      %1543 = vmatprep.subr.bf16.mxu0 0
      %1544 = vmatpush1.bf16.msra.mxu0 0
      %1545 = vmatprep.subr.bf16.mxu0 0
      %1546 = vmatpush1.bf16.msra.mxu0 0
      %1547 = vmatprep.subr.bf16.mxu0 0
      %1548 = vmatpush1.bf16.msra.mxu0 0
      %1549 = vmatprep.subr.bf16.mxu0 0
      %1550 = vmatpush1.bf16.msra.mxu0 0
      %1551 = vmatprep.subr.bf16.mxu0 0
      %1552 = vmatpush1.bf16.msra.mxu0 0
      %1553 = vmatprep.mubr.bf16.mxu0 0
      %1554 = vmatmul.mubr.bf16.gmra.mrb[0].mxu0 %v1510
      %v1555 = vpop.f32.mrb[0].mxu0
      %v1556 = vadd.f32 0.0, %v1555
      %v1557 = vpop.f32.mrb[0].mxu0
      %v1558 = vpop.f32.mrb[0].mxu0
      %v1559 = vadd.f32 0.0, %v1558
      %v1560 = vpop.f32.mrb[0].mxu0
      %1561 = vmatprep.mubr.bf16.mxu0 0
      %1562 = vmatmul.mubr.bf16.gmra.mrb[0].mxu0 %v1513
      %v1563 = vpop.f32.mrb[0].mxu0
      %v1564 = vadd.f32 0.0, %v1563
      %v1565 = vpop.f32.mrb[0].mxu0
      %v1566 = vpop.f32.mrb[0].mxu0
      %v1567 = vadd.f32 0.0, %v1566
      %v1568 = vpop.f32.mrb[0].mxu0
      %1569 = vmatprep.mubr.bf16.mxu0 0
      %1570 = vmatmul.mubr.bf16.gmra.mrb[0].mxu0 %v1516
      %v1571 = vpop.f32.mrb[0].mxu0
      %v1572 = vadd.f32 0.0, %v1571
      %v1573 = vpop.f32.mrb[0].mxu0
      %v1574 = vpop.f32.mrb[0].mxu0
      %v1575 = vadd.f32 0.0, %v1574
      %v1576 = vpop.f32.mrb[0].mxu0
      %1577 = vmatprep.mubr.bf16.mxu0 0
      %1578 = vmatmul.mubr.bf16.gmra.mrb[0].mxu0 %v1519
      %v1579 = vpop.f32.mrb[0].mxu0
      %v1580 = vadd.f32 0.0, %v1579
      %v1581 = vpop.f32.mrb[0].mxu0
      %v1582 = vpop.f32.mrb[0].mxu0
      %v1583 = vadd.f32 0.0, %v1582
      %v1584 = vpop.f32.mrb[0].mxu0
      %1585 = vdwg.mxu0
      %v1594 = vunpack.c.l.b16 %v911
      %v1595 = vunpack.c.l.b16 %v912
      %v1596 = vunpack.c.l.b16 %v913
      %v1597 = vunpack.c.l.b16 %v914
      %v1598 = vunpack.c.l.b16 %v915
      %v1599 = vunpack.c.l.b16 %v916
      %v1600 = vunpack.c.l.b16 %v917
      %v1601 = vunpack.c.l.b16 %v918
      %v1602 = vpack.c.b16 %v1595, %v1594
      %v1603 = vpack.c.b16 %v1597, %v1596
      %v1604 = vpack.c.b16 %v1599, %v1598
      %v1605 = vpack.c.b16 %v1601, %v1600
      %v1611 = vsel %vm1283, %v1477, 0
      %v1614 = vsel %vm1283, %v1478, 0
      %v1617 = vsel %vm1283, %v1479, 0
      %v1620 = vsel %vm1283, %v1480, 0
      %1622 = vmatprep.subr.bf16.mxu0 0
      %1623 = vmatpush1.bf16.msra.mxu0 %v1602
      %1624 = vmatprep.subr.bf16.mxu0 0
      %1625 = vmatpush1.bf16.msra.mxu0 %v1603
      %1626 = vmatprep.subr.bf16.mxu0 0
      %1627 = vmatpush1.bf16.msra.mxu0 %v1604
      %1628 = vmatprep.subr.bf16.mxu0 0
      %1629 = vmatpush1.bf16.msra.mxu0 %v1605
      %1630 = vmatprep.subr.bf16.mxu0 0
      %1631 = vmatpush1.bf16.msra.mxu0 0
      %1632 = vmatprep.subr.bf16.mxu0 0
      %1633 = vmatpush1.bf16.msra.mxu0 0
      %1634 = vmatprep.subr.bf16.mxu0 0
      %1635 = vmatpush1.bf16.msra.mxu0 0
      %1636 = vmatprep.subr.bf16.mxu0 0
      %1637 = vmatpush1.bf16.msra.mxu0 0
      %1638 = vmatprep.subr.bf16.mxu0 0
      %1639 = vmatpush1.bf16.msra.mxu0 0
      %1640 = vmatprep.subr.bf16.mxu0 0
      %1641 = vmatpush1.bf16.msra.mxu0 0
      %1642 = vmatprep.subr.bf16.mxu0 0
      %1643 = vmatpush1.bf16.msra.mxu0 0
      %1644 = vmatprep.subr.bf16.mxu0 0
      %1645 = vmatpush1.bf16.msra.mxu0 0
      %1646 = vmatprep.subr.bf16.mxu0 0
      %1647 = vmatpush1.bf16.msra.mxu0 0
      %1648 = vmatprep.subr.bf16.mxu0 0
      %1649 = vmatpush1.bf16.msra.mxu0 0
      %1650 = vmatprep.subr.bf16.mxu0 0
      %1651 = vmatpush1.bf16.msra.mxu0 0
      %1652 = vmatprep.subr.bf16.mxu0 0
      %1653 = vmatpush1.bf16.msra.mxu0 0
      %1654 = vmatprep.mubr.bf16.mxu0 0
      %1655 = vmatmul.mubr.bf16.gmra.mrb[0].mxu0 %v1611
      %v1656 = vpop.f32.mrb[0].mxu0
      %v1657 = vadd.f32 %v1556, %v1656
      %v1658 = vpop.f32.mrb[0].mxu0
      %v1659 = vpop.f32.mrb[0].mxu0
      %v1660 = vadd.f32 %v1559, %v1659
      %v1661 = vpop.f32.mrb[0].mxu0
      %1662 = vmatprep.mubr.bf16.mxu0 0
      %1663 = vmatmul.mubr.bf16.gmra.mrb[0].mxu0 %v1614
      %v1664 = vpop.f32.mrb[0].mxu0
      %v1665 = vadd.f32 %v1564, %v1664
      %v1666 = vpop.f32.mrb[0].mxu0
      %v1667 = vpop.f32.mrb[0].mxu0
      %v1668 = vadd.f32 %v1567, %v1667
      %v1669 = vpop.f32.mrb[0].mxu0
      %1670 = vmatprep.mubr.bf16.mxu0 0
      %1671 = vmatmul.mubr.bf16.gmra.mrb[0].mxu0 %v1617
      %v1672 = vpop.f32.mrb[0].mxu0
      %v1673 = vadd.f32 %v1572, %v1672
      %v1674 = vpop.f32.mrb[0].mxu0
      %v1675 = vpop.f32.mrb[0].mxu0
      %v1676 = vadd.f32 %v1575, %v1675
      %v1677 = vpop.f32.mrb[0].mxu0
      %1678 = vmatprep.mubr.bf16.mxu0 0
      %1679 = vmatmul.mubr.bf16.gmra.mrb[0].mxu0 %v1620
      %v1680 = vpop.f32.mrb[0].mxu0
      %v1681 = vadd.f32 %v1580, %v1680
      %v1682 = vpop.f32.mrb[0].mxu0
      %v1683 = vpop.f32.mrb[0].mxu0
      %v1684 = vadd.f32 %v1583, %v1683
      %v1685 = vpop.f32.mrb[0].mxu0
      %1686 = vdwg.mxu0
      %v1687 = vrcp.pop %v1436
      %v1688 = vrcp.pop %v1437
      %v1689 = vrcp.pop %v1438
      %v1690 = vrcp.pop %v1439
      %v1691 = vrcp.pop %v1440
      %v1692 = vrcp.pop %v1441
      %v1693 = vrcp.pop %v1442
      %v1694 = vrcp.pop %v1443
      %v1695 = vmul.f32 %v1657, %v1687
      %v1696 = vmul.f32 %v1660, %v1688
      %v1697 = vmul.f32 %v1665, %v1689
      %v1698 = vmul.f32 %v1668, %v1690
      %v1699 = vmul.f32 %v1673, %v1691
      %v1700 = vmul.f32 %v1676, %v1692
      %v1701 = vmul.f32 %v1681, %v1693
      %v1702 = vmul.f32 %v1684, %v1694
      %v1703 = vpack.c.bf16 %v1696, %v1695
      %v1704 = vpack.c.bf16 %v1698, %v1697
      %v1705 = vpack.c.bf16 %v1700, %v1699
      %v1706 = vpack.c.bf16 %v1702, %v1701
      %v1711 = vunpack.c.l.b16 %v1703
      %v1712 = vunpack.c.h.b16 %v1703
      %v1713 = vunpack.c.l.b16 %v1704
      %v1714 = vunpack.c.h.b16 %v1704
      %v1715 = vunpack.c.l.b16 %v1705
      %v1716 = vunpack.c.h.b16 %v1705
      %v1717 = vunpack.c.l.b16 %v1706
      %v1718 = vunpack.c.h.b16 %v1706
      %v1719 = vpack.c.b16 %v1711, %v1711
      %v1720 = vpack.c.b16 %v1712, %v1712
      %v1721 = vpack.c.b16 %v1713, %v1713
      %v1722 = vpack.c.b16 %v1714, %v1714
      %v1723 = vpack.c.b16 %v1715, %v1715
      %v1724 = vpack.c.b16 %v1716, %v1716
      %v1725 = vpack.c.b16 %v1717, %v1717
      %v1726 = vpack.c.b16 %v1718, %v1718
      %vm1735 = vcmask 125952
      %1736 = vst.msk [vmem:[%s883] sm:$0xf] %vm1735, %v1719
      %1737 = vst.msk [vmem:[%s883 + $0x4] sm:$0xf] %vm1735, %v1720
      %1738 = vst.msk [vmem:[%s883 + $0x8] sm:$0xf] %vm1735, %v1721
      %1739 = vst.msk [vmem:[%s883 + $0xc] sm:$0xf] %vm1735, %v1722
      %1740 = vst.msk [vmem:[%s883 + $0x10] sm:$0xf] %vm1735, %v1723
      %1741 = vst.msk [vmem:[%s883 + $0x14] sm:$0xf] %vm1735, %v1724
      %1742 = vst.msk [vmem:[%s883 + $0x18] sm:$0xf] %vm1735, %v1725
      %1743 = vst.msk [vmem:[%s883 + $0x1c] sm:$0xf] %vm1735, %v1726
      %p1744 = scmp.lt.s32.totalorder %s27, 3
      %s1745 = scalar_select %p1744, %s27, 3
      %p1746 = scmp.lt.s32.totalorder %s28, 1
      %s1747 = scalar_select %p1746, %s28, 1
      %s1748 = smul.addr %s1747, 8
      %s1749 = smul.addr %s1745, 16
      %s1750 = sadd.s32 %s1748, %s1749
      %s1751 = smul.addr %s1750, 4
      %s1752 = scalar_lea.vmem %s9, %s1751
      %p1753 = scmp.lt.s32.totalorder %s27, 3
      %s1754 = scalar_select %p1753, %s27, 3
      %p1755 = scmp.lt.s32.totalorder %s28, 1
      %s1756 = scalar_select %p1755, %s28, 1
      %s1757 = smul.addr %s1756, 8
      %s1758 = smul.addr %s1754, 16
      %s1759 = sadd.s32 %s1757, %s1758
      %s1760 = smul.addr %s1759, 8
      %s1761 = scalar_lea.vmem %s10, %s1760
      // Predicated region
      $region53: #{tpu_custom_call.1} parent=51 // pred_check
        %p1762 = pneg %p357
      $region54: #{tpu_custom_call.1} parent=51 // pred_check_branch
        %1764 = sbr.rel (%p1762) target = $region56
      $region55: #{tpu_custom_call.1} parent=51 // pred_region
        _
      $region56: #{tpu_custom_call.1} parent=51 // pred_fallthru
        _
      // Predicated region
      $region57: #{tpu_custom_call.1} parent=51 // pred_check
        %p1765 = pneg %p385
      $region58: #{tpu_custom_call.1} parent=51 // pred_check_branch
        %1767 = sbr.rel (%p1765) target = $region60
      $region59: #{tpu_custom_call.1} parent=51 // pred_region
        _
      $region60: #{tpu_custom_call.1} parent=51 // pred_fallthru
        _
    $region52: #{tpu_custom_call.1} parent=5 // pred_fallthru
      _
    %p1768 = scmp.le.s32.totalorder 2, %s18
    // Predicated region
    $region61: #{tpu_custom_call.1} parent=5 // pred_check
      %p1769 = pneg %p1768
    $region62: #{tpu_custom_call.1} parent=5 // pred_check_branch
      %1771 = sbr.rel (%p1769) target = $region64
    $region63: #{tpu_custom_call.1} parent=5 // pred_region
      %s1772 = ssub.s32 %s18, 2
      // Predicated region
      $region65: #{tpu_custom_call.1} parent=63 // pred_check
        %p1773 = pneg %p363
      $region66: #{tpu_custom_call.1} parent=63 // pred_check_branch
        %1775 = sbr.rel (%p1773) target = $region68
      $region67: #{tpu_custom_call.1} parent=63 // pred_region
        %p1776 = scmp.lt.s32.totalorder %s29, 3
        %s1777 = scalar_select %p1776, %s29, 3
        %p1778 = scmp.lt.s32.totalorder %s30, 1
        %s1779 = scalar_select %p1778, %s30, 1
        %s1780 = smul.addr %s1779, 8
        %s1781 = smul.addr %s1777, 16
        %s1782 = sadd.s32 %s1780, %s1781
        %s1783 = smul.addr %s1782, 4
        %s1784 = scalar_lea.vmem %s9, %s1783
      $region68: #{tpu_custom_call.1} parent=63 // pred_fallthru
        _
      // Predicated region
      $region69: #{tpu_custom_call.1} parent=63 // pred_check
        %p1785 = pneg %p391
      $region70: #{tpu_custom_call.1} parent=63 // pred_check_branch
        %1787 = sbr.rel (%p1785) target = $region72
      $region71: #{tpu_custom_call.1} parent=63 // pred_region
        %p1788 = scmp.lt.s32.totalorder %s29, 3
        %s1789 = scalar_select %p1788, %s29, 3
        %p1790 = scmp.lt.s32.totalorder %s30, 1
        %s1791 = scalar_select %p1790, %s30, 1
        %s1792 = smul.addr %s1791, 8
        %s1793 = smul.addr %s1789, 16
        %s1794 = sadd.s32 %s1792, %s1793
        %s1795 = smul.addr %s1794, 8
        %s1796 = scalar_lea.vmem %s10, %s1795
      $region72: #{tpu_custom_call.1} parent=63 // pred_fallthru
        _
    $region64: #{tpu_custom_call.1} parent=5 // pred_fallthru
      _
  $region6: #{tpu_custom_call.1} parent=0 // loop_footer
    %s22 = sadd.s32 1, %s18
  $region7: #{tpu_custom_call.1} parent=0 // loop_footer_branch
    %17 = sbr.rel target = $region3
  $region8: #{tpu_custom_call.1} parent=0 // loop_exit
    _

</llo_original>
